<compile_context>
chip_gen: v5e
topology: v5e:2x2
jax: 0.10.0
libtpu: 0.0.40
codegen_flags: <defaults>
</compile_context>

<pallas_src>
import numpy as np
import jax
import jax.numpy as jnp
from jax.experimental import pallas as pl
from jax.experimental.pallas import tpu as pltpu


# ----------------------------------------------------------------------------- helpers
def _layernorm(x, g, b, eps=1e-5):
    mu = jnp.mean(x, axis=-1, keepdims=True)
    xc = x - mu
    var = jnp.mean(xc * xc, axis=-1, keepdims=True)
    return xc * jax.lax.rsqrt(var + eps) * g + b


def _gelu(x):
    # exact (erf) GELU, matching torch.nn.GELU() default
    return 0.5 * x * (1.0 + jax.lax.erf(x * (1.0 / np.sqrt(2.0))))


def marginal_prob_std(x, t, sigma=25.0):
    std = jnp.sqrt((jnp.exp(2.0 * t * np.log(sigma)) - 1.0) / (2.0 * np.log(sigma)))
    return x, std


# ----------------------------------------------------------------------------- kernel
# per-layer vector slab row layout (vecs[l]):
#   0: qvec (cls @ Wq + bq)   1: red_b2   2: attn_ob   3: fc_b2   4: ff_b2
#   5..8:  LayerNorm gamma (norm1..norm4)      9..12: LayerNorm beta (norm1..norm4)
def _make_kernel(num_blocks, num_heads, embed_dim, b_blk, n_tok, n_feat):
    E = embed_dim
    NH = num_heads
    dh = E // NH
    scale = 1.0 / np.sqrt(dh)
    M = b_blk * n_tok                      # flattened token rows per grid step
    L = num_blocks

    def kernel(x_ref, maskb_ref, bvec_ref,
               embed_w_ref, consts_ref, hsum_ref,
               ee_w_ref, kv_w_ref, kv_b_ref, vecs_ref,
               w1_ref, w2_ref, b1_ref, outp_ref,
               o_ref):
        # flatten (batch, tokens) -> rows for all token-wise matmuls
        x = x_ref[...].reshape(M, n_feat)
        maskb = maskb_ref[...]                     # [b_blk, n_tok, 1] additive key bias
        bv = bvec_ref[...]                         # [b_blk, L+1, E]  per-batch folded terms
        consts = consts_ref[...]                   # [2, E]  (embed_b ; cls)
        hsum = hsum_ref[...]                       # [E, NH] 0/1 head-sum matrix
        cls = consts[1:2]                          # [1, E]

        # x = self.embed(x)
        h = jnp.dot(x, embed_w_ref[...], preferred_element_type=jnp.float32) + consts[0:1]

        for l in range(L):
            ee = ee_w_ref[l]                       # [3, E, E]  (red_w1x, red_w2, attn_ow)
            vec = vecs_ref[l]                      # [13, E]
            kvw = kv_w_ref[l]                      # [E, 2E]
            kvb = kv_b_ref[l]                      # [1, 2E]
            w1s = w1_ref[l]                        # [2, E, H]  (fc_w1, ff_w1)
            w2s = w2_ref[l]                        # [2, H, E]  (fc_w2, ff_w2)
            b1s = b1_ref[l]                        # [2, H]     (fc_b1, ff_b1)

            # ---- cat((x, e), -1); cat((x, t), -1); reduce_dim ------------------------
            # rank-1 terms e*W1e + t*W1t + b1 were folded per (batch, layer) host-side.
            bias_l = bv[:, l, :]                                           # [b_blk, E]
            r = jnp.dot(h, ee[0], preferred_element_type=jnp.float32)      # [M, E]
            r = (r.reshape(b_blk, n_tok, E) + bias_l[:, None, :]).reshape(M, E)
            r = jnp.maximum(r, 0.0)                                        # ReLU
            h = jnp.dot(r, ee[1], preferred_element_type=jnp.float32) + vec[1:2]

            # ---- cross attention (single cls query, fused K/V, all heads at once) ----
            q = vec[0:1]                                                   # [1, E]
            kv = jnp.dot(h, kvw, preferred_element_type=jnp.float32) + kvb  # [M, 2E]
            k = kv[:, :E]
            v = kv[:, E:]

            s = jnp.dot(k * q, hsum, preferred_element_type=jnp.float32) * scale  # [M, NH]
            s3 = s.reshape(b_blk, n_tok, NH) + maskb
            s3 = s3 - jnp.max(s3, axis=1, keepdims=True)
            p3 = jnp.exp(s3)
            p3 = p3 / jnp.sum(p3, axis=1, keepdims=True)                   # softmax over tokens
            # head-channel expansion as lane replication (off the MXU)
            p2 = p3.reshape(M, NH)
            p_full = jnp.broadcast_to(p2[:, :, None], (M, NH, dh)).reshape(M, E)
            heads = jnp.sum((p_full * v).reshape(b_blk, n_tok, E), axis=1)  # [b_blk, E]
            attn = jnp.dot(heads, ee[2], preferred_element_type=jnp.float32) + vec[2:3]

            # ---- cls-token stream -----------------------------------------------------
            c1 = _layernorm(cls + attn, vec[5:6], vec[9:10])               # [b_blk, E]
            f = _gelu(jnp.dot(c1, w1s[0], preferred_element_type=jnp.float32) + b1s[0:1])
            f = jnp.dot(f, w2s[0], preferred_element_type=jnp.float32) + vec[3:4]
            c2 = _layernorm(f + c1, vec[6:7], vec[10:11])                  # [b_blk, E]

            # ---- token stream -----------------------------------------------------------
            h3 = _layernorm(h.reshape(b_blk, n_tok, E) + c2[:, None, :], vec[7:8], vec[11:12])
            h = h3.reshape(M, E)
            f2 = _gelu(jnp.dot(h, w1s[1], preferred_element_type=jnp.float32) + b1s[1:2])
            f2 = jnp.dot(f2, w2s[1], preferred_element_type=jnp.float32) + vec[4:5]
            h = _layernorm(h + f2, vec[8:9], vec[12:13])

        # output = self.out(x) / std   (1/std precomputed host-side, multiply only)
        outp = outp_ref[...]                                                # [E+1, F]
        out = jnp.dot(h, outp[:E, :], preferred_element_type=jnp.float32) + outp[E:, :]
        isb = bv[:, L, 0:1]                                                 # [b_blk, 1]
        o_ref[...] = out.reshape(b_blk, n_tok, n_feat) * isb[:, None, :]

    return kernel


# ----------------------------------------------------------------------------- params
def init_params(key, n_feat, E, H, L):
    ks = iter(jax.random.split(key, 30))

    def w(shape, s=0.05):
        return jax.random.normal(next(ks), shape, jnp.float32) * s

    p = {}
    p['embed_w'] = w((n_feat, E));            p['embed_b'] = w((1, E))
    p['cls'] = jnp.ones((1, E), jnp.float32)                 # nn.Parameter(torch.ones(1,1,E))
    p['red_w1'] = w((L, E + 2, E));           p['red_b1'] = w((L, 1, E))
    p['red_w2'] = w((L, E, E));               p['red_b2'] = w((L, 1, E))
    p['qkv_w'] = w((L, E, 3 * E));            p['qkv_b'] = w((L, 1, 3 * E))
    p['attn_ow'] = w((L, E, E));              p['attn_ob'] = w((L, 1, E))
    p['fc_w1'] = w((L, E, H));                p['fc_b1'] = w((L, 1, H))
    p['fc_w2'] = w((L, H, E));                p['fc_b2'] = w((L, 1, E))
    p['ff_w1'] = w((L, E, H));                p['ff_b1'] = w((L, 1, H))
    p['ff_w2'] = w((L, H, E));                p['ff_b2'] = w((L, 1, E))
    p['ln_g'] = jnp.ones((L, 4, 1, E), jnp.float32)
    p['ln_b'] = jnp.zeros((L, 4, 1, E), jnp.float32)
    p['out_w'] = w((E, n_feat));              p['out_b'] = w((1, n_feat))
    # parameters of embed_t / embed_e (dead code in the original forward)
    p['gfp_t_W'] = jax.random.normal(next(ks), (E // 2,), jnp.float32) * 30.0
    p['gfp_e_W'] = jax.random.normal(next(ks), (E // 2,), jnp.float32) * 30.0
    p['emb_t_w'] = w((E, E));                 p['emb_t_b'] = w((1, E))
    p['emb_e_w'] = w((E, E));                 p['emb_e_b'] = w((1, E))
    return p


# ----------------------------------------------------------------------------- wrapper
def _prepare_weights(params, num_heads):
    """Host-side packing/splitting so the kernel sees few refs and never sub-slices them."""
    E = params['embed_w'].shape[1]
    dh = E // num_heads
    red_w1 = params['red_w1']
    qkv_w, qkv_b = params['qkv_w'], params['qkv_b']

    # 0/1 head-grouping matrix: hsum[e, h] = 1 iff channel e belongs to head h
    hsum = jnp.asarray(np.repeat(np.eye(num_heads, dtype=np.float32), dh, axis=0))   # [E, NH]
    # query depends only on the fixed cls token -> fold projection host-side
    qvec = (jnp.einsum('ie,lef->lif', params['cls'], qkv_w[:, :, :E])
            + qkv_b[:, :, :E])                                                        # [L, 1, E]

    ee_w = jnp.stack([red_w1[:, :E, :], params['red_w2'], params['attn_ow']], axis=1)  # [L,3,E,E]
    kv_w = qkv_w[:, :, E:]                                                             # [L,E,2E]
    kv_b = qkv_b[:, :, E:]                                                             # [L,1,2E]
    vecs = jnp.concatenate([qvec, params['red_b2'], params['attn_ob'],
                            params['fc_b2'], params['ff_b2'],
                            params['ln_g'][:, :, 0, :], params['ln_b'][:, :, 0, :]],
                           axis=1)                                                     # [L,13,E]
    w1 = jnp.stack([params['fc_w1'], params['ff_w1']], axis=1)                         # [L,2,E,H]
    w2 = jnp.stack([params['fc_w2'], params['ff_w2']], axis=1)                         # [L,2,H,E]
    b1 = jnp.concatenate([params['fc_b1'], params['ff_b1']], axis=1)                   # [L,2,H]
    consts = jnp.concatenate([params['embed_b'], params['cls']], axis=0)               # [2,E]
    outp = jnp.concatenate([params['out_w'], params['out_b']], axis=0)                 # [E+1,F]
    return [params['embed_w'], consts, hsum, ee_w, kv_w, kv_b, vecs, w1, w2, b1, outp]


def _pick_batch_block(B, N, max_rows=2048, min_grid=2):
    """Largest batch divisor keeping b_blk*N VMEM-friendly, preferring >=2 grid steps
    so megacore parts (v7x) get both TensorCores."""
    divs = [d for d in range(1, B + 1) if B % d == 0]
    fit = [d for d in divs if d * N <= max_rows] or [1]
    pref = [d for d in fit if B // d >= min_grid]
    return max(pref) if pref else max(fit)


def gen_forward(params, x, t, e, mask=None, *, num_heads, sigma=25.0, batch_block=None):
    B, N, F = x.shape
    E = params['embed_w'].shape[1]
    L = params['red_w1'].shape[0]
    assert E % num_heads == 0

    # NOTE: embed_t_/embed_e_ (GaussianFourierProjection + Linear + SiLU) are computed and
    # immediately discarded in the PyTorch forward (dead code) -> intentionally not evaluated.

    # --- fold the per-batch rank-1 reduce_dim terms and 1/std host-side --------------
    _, std = marginal_prob_std(x, t, sigma)
    w1e = params['red_w1'][:, E, :]            # [L, E]
    w1t = params['red_w1'][:, E + 1, :]        # [L, E]
    b1r = params['red_b1'][:, 0, :]            # [L, E]
    bias_all = (e[:, None, None] * w1e[None]
                + t[:, None, None] * w1t[None] + b1r[None])                 # [B, L, E]
    inv_row = jnp.broadcast_to((1.0 / std)[:, None, None], (B, 1, E))       # [B, 1, E]
    bvec = jnp.concatenate([bias_all, inv_row], axis=1).astype(jnp.float32)  # [B, L+1, E]

    # --- key_padding_mask -> additive bias
    if mask is None:
        maskb = jnp.zeros((B, N, 1), jnp.float32)
    else:
        maskb = jnp.where(mask, -1e9, 0.0).astype(jnp.float32)[:, :, None]

    weights = _prepare_weights(params, num_heads)

    b_blk = batch_block if batch_block is not None else _pick_batch_block(B, N)
    assert B % b_blk == 0, "batch_block must divide batch size"
    grid = (B // b_blk,)
    kernel = _make_kernel(L, num_heads, E, b_blk, N, F)

    def _blk(shape):
        return pl.BlockSpec(shape, lambda g, _nd=len(shape): (g,) + (0,) * (_nd - 1))

    def _const_spec(shape):
        return pl.BlockSpec(shape, lambda g, _nd=len(shape): (0,) * _nd)

    in_specs = ([_blk((b_blk, N, F)),            # x
                 _blk((b_blk, N, 1)),            # mask additive bias
                 _blk((b_blk, L + 1, E))]        # per-batch folded bias rows + 1/std
                + [_const_spec(wt.shape) for wt in weights])

    return pl.pallas_call(
        kernel,
        out_shape=jax.ShapeDtypeStruct((B, N, F), jnp.float32),
        grid=grid,
        in_specs=in_specs,
        out_specs=_blk((b_blk, N, F)),
        compiler_params=pltpu.CompilerParams(
            dimension_semantics=("parallel",)),   # batch blocks are independent (megacore on v7x)
    )(x.astype(jnp.float32), maskb, bvec, *weights)


# ----------------------------------------------------------------------------- plain-JAX reference
def gen_forward_ref(params, x, t, e, mask=None, *, num_heads, sigma=25.0):
    B, N, F = x.shape
    E = params['embed_w'].shape[1]
    L = params['red_w1'].shape[0]
    dh = E // num_heads

    h = x @ params['embed_w'] + params['embed_b']
    x_cls = jnp.broadcast_to(params['cls'][None], (B, 1, E))
    e_exp = jnp.broadcast_to(e[:, None, None], (B, N, 1))
    t_exp = jnp.broadcast_to(t[:, None, None], (B, N, 1))
    maskb = (jnp.zeros((B, N), jnp.float32) if mask is None
             else jnp.where(mask, -1e9, 0.0).astype(jnp.float32))

    for l in range(L):
        xc = jnp.concatenate([h, e_exp, t_exp], axis=-1)
        r = jnp.maximum(xc @ params['red_w1'][l] + params['red_b1'][l], 0.0)
        h = r @ params['red_w2'][l] + params['red_b2'][l]

        qkv_w, qkv_b = params['qkv_w'][l], params['qkv_b'][l]
        q = x_cls @ qkv_w[:, :E] + qkv_b[:, :E]
        k = h @ qkv_w[:, E:2 * E] + qkv_b[:, E:2 * E]
        v = h @ qkv_w[:, 2 * E:] + qkv_b[:, 2 * E:]
        qh = q.reshape(B, 1, num_heads, dh).transpose(0, 2, 1, 3)
        kh = k.reshape(B, N, num_heads, dh).transpose(0, 2, 1, 3)
        vh = v.reshape(B, N, num_heads, dh).transpose(0, 2, 1, 3)
        s = jnp.einsum('bhqd,bhkd->bhqk', qh, kh) / np.sqrt(dh) + maskb[:, None, None, :]
        p = jax.nn.softmax(s, axis=-1)
        a = jnp.einsum('bhqk,bhkd->bhqd', p, vh).transpose(0, 2, 1, 3).reshape(B, 1, E)
        attn = a @ params['attn_ow'][l] + params['attn_ob'][l]

        c1 = _layernorm(x_cls + attn, params['ln_g'][l, 0], params['ln_b'][l, 0])
        f = _gelu(c1 @ params['fc_w1'][l] + params['fc_b1'][l])
        f = f @ params['fc_w2'][l] + params['fc_b2'][l]
        c2 = _layernorm(f + c1, params['ln_g'][l, 1], params['ln_b'][l, 1])

        h = _layernorm(h + c2, params['ln_g'][l, 2], params['ln_b'][l, 2])
        f2 = _gelu(h @ params['ff_w1'][l] + params['ff_b1'][l])
        f2 = f2 @ params['ff_w2'][l] + params['ff_b2'][l]
        h = _layernorm(h + f2, params['ln_g'][l, 3], params['ln_b'][l, 3])

    _, std = marginal_prob_std(x, t, sigma)
    return (h @ params['out_w'] + params['out_b']) / std[:, None, None]


# ----------------------------------------------------------------------------- main
if __name__ == "__main__":
    B, N, F = 2, 8, 4              # batch, tokens (nhits), n_feat_dim
    E, H, L, HEADS = 32, 64, 2, 4  # embed_dim, hidden_dim, num_encoder_blocks, num_attn_heads

    key = jax.random.PRNGKey(0)
    kp, kx, kt, ke = jax.random.split(key, 4)
    params = init_params(kp, F, E, H, L)

    x = jax.random.normal(kx, (B, N, F), jnp.float32)
    t = jax.random.uniform(kt, (B,), jnp.float32, minval=0.05, maxval=1.0)
    e = jax.random.uniform(ke, (B,), jnp.float32, minval=0.1, maxval=1.0)
    mask = jnp.zeros((B, N), dtype=bool).at[1, N - 2:].set(True)   # pad last 2 tokens of batch 1

    out = gen_forward(params, x, t, e, mask, num_heads=HEADS)
    out = jax.block_until_ready(out)

    ref = gen_forward_ref(params, x, t, e, mask, num_heads=HEADS)
    err = float(jnp.max(jnp.abs(out - ref)))
    assert out.shape == (B, N, F)
    assert err < 1e-3, f"max abs err vs reference: {err}"
    print("KERNEL_OK")
</pallas_src>

<mosaic_0001>
module attributes {stable_mosaic.version = 11 : i64} {
  func.func @kernel(%arg0: i32, %arg1: memref<1x8x4xf32, #tpu.memory_space<vmem>>, %arg2: memref<1x8x1xf32, #tpu.memory_space<vmem>>, %arg3: memref<1x3x32xf32, #tpu.memory_space<vmem>>, %arg4: memref<4x32xf32, #tpu.memory_space<vmem>>, %arg5: memref<2x32xf32, #tpu.memory_space<vmem>>, %arg6: memref<32x4xf32, #tpu.memory_space<vmem>>, %arg7: memref<2x3x32x32xf32, #tpu.memory_space<vmem>>, %arg8: memref<2x32x64xf32, #tpu.memory_space<vmem>>, %arg9: memref<2x1x64xf32, #tpu.memory_space<vmem>>, %arg10: memref<2x13x32xf32, #tpu.memory_space<vmem>>, %arg11: memref<2x2x32x64xf32, #tpu.memory_space<vmem>>, %arg12: memref<2x2x64x32xf32, #tpu.memory_space<vmem>>, %arg13: memref<2x2x64xf32, #tpu.memory_space<vmem>>, %arg14: memref<33x4xf32, #tpu.memory_space<vmem>>, %arg15: memref<1x8x4xf32, #tpu.memory_space<vmem>>) attributes {dimension_semantics = [#tpu.dimension_semantics<parallel>], iteration_bounds = array<i64: 2>, scalar_prefetch = 0 : i64, scratch_operands = 0 : i64, tpu.core_type = #tpu.core_type<tc>, window_params = [{transform_indices = @transform_0, window_bounds = array<i64: 1, 8, 4>}, {transform_indices = @transform_1, window_bounds = array<i64: 1, 8, 1>}, {transform_indices = @transform_2, window_bounds = array<i64: 1, 3, 32>}, {pipeline_mode = #tpu.pipeline_mode<synchronous>, transform_indices = @transform_3, window_bounds = array<i64: 4, 32>}, {pipeline_mode = #tpu.pipeline_mode<synchronous>, transform_indices = @transform_4, window_bounds = array<i64: 2, 32>}, {pipeline_mode = #tpu.pipeline_mode<synchronous>, transform_indices = @transform_5, window_bounds = array<i64: 32, 4>}, {pipeline_mode = #tpu.pipeline_mode<synchronous>, transform_indices = @transform_6, window_bounds = array<i64: 2, 3, 32, 32>}, {pipeline_mode = #tpu.pipeline_mode<synchronous>, transform_indices = @transform_7, window_bounds = array<i64: 2, 32, 64>}, {pipeline_mode = #tpu.pipeline_mode<synchronous>, transform_indices = @transform_8, window_bounds = array<i64: 2, 1, 64>}, {pipeline_mode = #tpu.pipeline_mode<synchronous>, transform_indices = @transform_9, window_bounds = array<i64: 2, 13, 32>}, {pipeline_mode = #tpu.pipeline_mode<synchronous>, transform_indices = @transform_10, window_bounds = array<i64: 2, 2, 32, 64>}, {pipeline_mode = #tpu.pipeline_mode<synchronous>, transform_indices = @transform_11, window_bounds = array<i64: 2, 2, 64, 32>}, {pipeline_mode = #tpu.pipeline_mode<synchronous>, transform_indices = @transform_12, window_bounds = array<i64: 2, 2, 64>}, {pipeline_mode = #tpu.pipeline_mode<synchronous>, transform_indices = @transform_13, window_bounds = array<i64: 33, 4>}, {transform_indices = @transform_14, window_bounds = array<i64: 1, 8, 4>}]} {
    %c0 = arith.constant 0 : index
    %c0_0 = arith.constant 0 : index
    %c0_1 = arith.constant 0 : index
    %0 = vector.load %arg1[%c0, %c0_0, %c0_1] : memref<1x8x4xf32, #tpu.memory_space<vmem>>, vector<1x8x4xf32>
    %1 = vector.shape_cast %0 : vector<1x8x4xf32> to vector<8x4xf32>
    %c0_2 = arith.constant 0 : index
    %c0_3 = arith.constant 0 : index
    %c0_4 = arith.constant 0 : index
    %2 = vector.load %arg2[%c0_2, %c0_3, %c0_4] : memref<1x8x1xf32, #tpu.memory_space<vmem>>, vector<1x8x1xf32>
    %c0_5 = arith.constant 0 : index
    %c0_6 = arith.constant 0 : index
    %c0_7 = arith.constant 0 : index
    %3 = vector.load %arg3[%c0_5, %c0_6, %c0_7] : memref<1x3x32xf32, #tpu.memory_space<vmem>>, vector<1x3x32xf32>
    %c0_8 = arith.constant 0 : index
    %c0_9 = arith.constant 0 : index
    %4 = vector.load %arg5[%c0_8, %c0_9] : memref<2x32xf32, #tpu.memory_space<vmem>>, vector<2x32xf32>
    %c0_10 = arith.constant 0 : index
    %c0_11 = arith.constant 0 : index
    %5 = vector.load %arg6[%c0_10, %c0_11] : memref<32x4xf32, #tpu.memory_space<vmem>>, vector<32x4xf32>
    %6 = vector.extract_strided_slice %4 {offsets = [1, 0], sizes = [1, 32], strides = [1, 1]} : vector<2x32xf32> to vector<1x32xf32>
    %c0_12 = arith.constant 0 : index
    %c0_13 = arith.constant 0 : index
    %7 = vector.load %arg4[%c0_12, %c0_13] : memref<4x32xf32, #tpu.memory_space<vmem>>, vector<4x32xf32>
    %cst = arith.constant dense<0.000000e+00> : vector<8x32xf32>
    %8 = tpu.matmul %1, %7, %cst {dimension_numbers = #tpu.dot_dimension_numbers<[1], [0], [0], [1], [0, 0, 1, 1], [], []>} : vector<8x4xf32>, vector<4x32xf32>, vector<8x32xf32> -> vector<8x32xf32>
    %9 = vector.extract_strided_slice %4 {offsets = [0, 0], sizes = [1, 32], strides = [1, 1]} : vector<2x32xf32> to vector<1x32xf32>
    %10 = vector.broadcast %9 : vector<1x32xf32> to vector<8x32xf32>
    %11 = arith.addf %8, %10 : vector<8x32xf32>
    %c0_14 = arith.constant 0 : index
    %c0_15 = arith.constant 0 : index
    %c0_16 = arith.constant 0 : index
    %c0_17 = arith.constant 0 : index
    %12 = vector.load %arg7[%c0_14, %c0_15, %c0_16, %c0_17] : memref<2x3x32x32xf32, #tpu.memory_space<vmem>>, vector<1x3x32x32xf32>
    %13 = vector.shape_cast %12 : vector<1x3x32x32xf32> to vector<3x32x32xf32>
    %c0_18 = arith.constant 0 : index
    %c0_19 = arith.constant 0 : index
    %c0_20 = arith.constant 0 : index
    %14 = vector.load %arg10[%c0_18, %c0_19, %c0_20] : memref<2x13x32xf32, #tpu.memory_space<vmem>>, vector<1x13x32xf32>
    %15 = vector.shape_cast %14 : vector<1x13x32xf32> to vector<13x32xf32>
    %c0_21 = arith.constant 0 : index
    %c0_22 = arith.constant 0 : index
    %c0_23 = arith.constant 0 : index
    %16 = vector.load %arg8[%c0_21, %c0_22, %c0_23] : memref<2x32x64xf32, #tpu.memory_space<vmem>>, vector<1x32x64xf32>
    %17 = vector.shape_cast %16 : vector<1x32x64xf32> to vector<32x64xf32>
    %c0_24 = arith.constant 0 : index
    %c0_25 = arith.constant 0 : index
    %c0_26 = arith.constant 0 : index
    %18 = vector.load %arg9[%c0_24, %c0_25, %c0_26] : memref<2x1x64xf32, #tpu.memory_space<vmem>>, vector<1x1x64xf32>
    %19 = vector.shape_cast %18 : vector<1x1x64xf32> to vector<1x64xf32>
    %c0_27 = arith.constant 0 : index
    %c0_28 = arith.constant 0 : index
    %c0_29 = arith.constant 0 : index
    %c0_30 = arith.constant 0 : index
    %20 = vector.load %arg11[%c0_27, %c0_28, %c0_29, %c0_30] : memref<2x2x32x64xf32, #tpu.memory_space<vmem>>, vector<1x2x32x64xf32>
    %21 = vector.shape_cast %20 : vector<1x2x32x64xf32> to vector<2x32x64xf32>
    %c0_31 = arith.constant 0 : index
    %c0_32 = arith.constant 0 : index
    %c0_33 = arith.constant 0 : index
    %c0_34 = arith.constant 0 : index
    %22 = vector.load %arg12[%c0_31, %c0_32, %c0_33, %c0_34] : memref<2x2x64x32xf32, #tpu.memory_space<vmem>>, vector<1x2x64x32xf32>
    %23 = vector.shape_cast %22 : vector<1x2x64x32xf32> to vector<2x64x32xf32>
    %c0_35 = arith.constant 0 : index
    %c0_36 = arith.constant 0 : index
    %c0_37 = arith.constant 0 : index
    %24 = vector.load %arg13[%c0_35, %c0_36, %c0_37] : memref<2x2x64xf32, #tpu.memory_space<vmem>>, vector<1x2x64xf32>
    %25 = vector.shape_cast %24 : vector<1x2x64xf32> to vector<2x64xf32>
    %26 = vector.extract_strided_slice %3 {offsets = [0, 0, 0], sizes = [1, 1, 32], strides = [1, 1, 1]} : vector<1x3x32xf32> to vector<1x1x32xf32>
    %27 = vector.shape_cast %26 : vector<1x1x32xf32> to vector<1x32xf32>
    %28 = vector.extract_strided_slice %13 {offsets = [0, 0, 0], sizes = [1, 32, 32], strides = [1, 1, 1]} : vector<3x32x32xf32> to vector<1x32x32xf32>
    %29 = vector.shape_cast %28 : vector<1x32x32xf32> to vector<32x32xf32>
    %cst_38 = arith.constant dense<0.000000e+00> : vector<8x32xf32>
    %30 = tpu.matmul %11, %29, %cst_38 {dimension_numbers = #tpu.dot_dimension_numbers<[1], [0], [0], [1], [0, 0, 1, 1], [], []>} : vector<8x32xf32>, vector<32x32xf32>, vector<8x32xf32> -> vector<8x32xf32>
    %31 = vector.shape_cast %30 : vector<8x32xf32> to vector<1x8x32xf32>
    %32 = vector.shape_cast %27 : vector<1x32xf32> to vector<1x1x32xf32>
    %33 = vector.broadcast %32 : vector<1x1x32xf32> to vector<1x8x32xf32>
    %34 = arith.addf %31, %33 : vector<1x8x32xf32>
    %35 = vector.shape_cast %34 : vector<1x8x32xf32> to vector<8x32xf32>
    %cst_39 = arith.constant 0.000000e+00 : f32
    %36 = vector.broadcast %cst_39 : f32 to vector<8x32xf32>
    %37 = arith.maximumf %35, %36 : vector<8x32xf32>
    %38 = vector.extract_strided_slice %13 {offsets = [1, 0, 0], sizes = [1, 32, 32], strides = [1, 1, 1]} : vector<3x32x32xf32> to vector<1x32x32xf32>
    %39 = vector.shape_cast %38 : vector<1x32x32xf32> to vector<32x32xf32>
    %cst_40 = arith.constant dense<0.000000e+00> : vector<8x32xf32>
    %40 = tpu.matmul %37, %39, %cst_40 {dimension_numbers = #tpu.dot_dimension_numbers<[1], [0], [0], [1], [0, 0, 1, 1], [], []>} : vector<8x32xf32>, vector<32x32xf32>, vector<8x32xf32> -> vector<8x32xf32>
    %41 = vector.extract_strided_slice %15 {offsets = [1, 0], sizes = [1, 32], strides = [1, 1]} : vector<13x32xf32> to vector<1x32xf32>
    %42 = vector.broadcast %41 : vector<1x32xf32> to vector<8x32xf32>
    %43 = arith.addf %40, %42 : vector<8x32xf32>
    %44 = vector.extract_strided_slice %15 {offsets = [0, 0], sizes = [1, 32], strides = [1, 1]} : vector<13x32xf32> to vector<1x32xf32>
    %cst_41 = arith.constant dense<0.000000e+00> : vector<8x64xf32>
    %45 = tpu.matmul %43, %17, %cst_41 {dimension_numbers = #tpu.dot_dimension_numbers<[1], [0], [0], [1], [0, 0, 1, 1], [], []>} : vector<8x32xf32>, vector<32x64xf32>, vector<8x64xf32> -> vector<8x64xf32>
    %46 = vector.broadcast %19 : vector<1x64xf32> to vector<8x64xf32>
    %47 = arith.addf %45, %46 : vector<8x64xf32>
    %48 = vector.extract_strided_slice %47 {offsets = [0, 0], sizes = [8, 32], strides = [1, 1]} : vector<8x64xf32> to vector<8x32xf32>
    %49 = vector.extract_strided_slice %47 {offsets = [0, 32], sizes = [8, 32], strides = [1, 1]} : vector<8x64xf32> to vector<8x32xf32>
    %50 = vector.broadcast %44 : vector<1x32xf32> to vector<8x32xf32>
    %51 = arith.mulf %48, %50 : vector<8x32xf32>
    %cst_42 = arith.constant dense<0.000000e+00> : vector<8x4xf32>
    %52 = tpu.matmul %51, %5, %cst_42 {dimension_numbers = #tpu.dot_dimension_numbers<[1], [0], [0], [1], [0, 0, 1, 1], [], []>} : vector<8x32xf32>, vector<32x4xf32>, vector<8x4xf32> -> vector<8x4xf32>
    %cst_43 = arith.constant 0.353553385 : f32
    %53 = vector.broadcast %cst_43 : f32 to vector<8x4xf32>
    %54 = arith.mulf %52, %53 : vector<8x4xf32>
    %55 = vector.shape_cast %54 : vector<8x4xf32> to vector<1x8x4xf32>
    %56 = vector.broadcast %2 : vector<1x8x1xf32> to vector<1x8x4xf32>
    %57 = arith.addf %55, %56 : vector<1x8x4xf32>
    %cst_44 = arith.constant dense<0xFF800000> : vector<1x4xf32>
    %58 = vector.multi_reduction <maximumf>, %57, %cst_44 [1] : vector<1x8x4xf32> to vector<1x4xf32>
    %59 = vector.shape_cast %58 : vector<1x4xf32> to vector<1x1x4xf32>
    %60 = vector.broadcast %59 : vector<1x1x4xf32> to vector<1x8x4xf32>
    %61 = arith.subf %57, %60 : vector<1x8x4xf32>
    %62 = math.exp %61 : vector<1x8x4xf32>
    %cst_45 = arith.constant dense<0.000000e+00> : vector<1x4xf32>
    %63 = vector.multi_reduction <add>, %62, %cst_45 [1] : vector<1x8x4xf32> to vector<1x4xf32>
    %64 = vector.shape_cast %63 : vector<1x4xf32> to vector<1x1x4xf32>
    %65 = vector.broadcast %64 : vector<1x1x4xf32> to vector<1x8x4xf32>
    %66 = arith.divf %62, %65 : vector<1x8x4xf32>
    %67 = vector.shape_cast %66 : vector<1x8x4xf32> to vector<8x4xf32>
    %68 = vector.shape_cast %67 : vector<8x4xf32> to vector<8x4x1xf32>
    %69 = vector.shape_cast %68 : vector<8x4x1xf32> to vector<8x4x1xf32>
    %70 = vector.broadcast %69 : vector<8x4x1xf32> to vector<8x4x8xf32>
    %71 = vector.shape_cast %70 : vector<8x4x8xf32> to vector<8x32xf32>
    %72 = arith.mulf %71, %49 : vector<8x32xf32>
    %73 = vector.shape_cast %72 : vector<8x32xf32> to vector<1x8x32xf32>
    %cst_46 = arith.constant dense<0.000000e+00> : vector<1x32xf32>
    %74 = vector.multi_reduction <add>, %73, %cst_46 [1] : vector<1x8x32xf32> to vector<1x32xf32>
    %75 = vector.extract_strided_slice %13 {offsets = [2, 0, 0], sizes = [1, 32, 32], strides = [1, 1, 1]} : vector<3x32x32xf32> to vector<1x32x32xf32>
    %76 = vector.shape_cast %75 : vector<1x32x32xf32> to vector<32x32xf32>
    %cst_47 = arith.constant dense<0.000000e+00> : vector<1x32xf32>
    %77 = tpu.matmul %74, %76, %cst_47 {dimension_numbers = #tpu.dot_dimension_numbers<[1], [0], [0], [1], [0, 0, 1, 1], [], []>} : vector<1x32xf32>, vector<32x32xf32>, vector<1x32xf32> -> vector<1x32xf32>
    %78 = vector.extract_strided_slice %15 {offsets = [2, 0], sizes = [1, 32], strides = [1, 1]} : vector<13x32xf32> to vector<1x32xf32>
    %79 = arith.addf %77, %78 : vector<1x32xf32>
    %80 = arith.addf %6, %79 : vector<1x32xf32>
    %81 = vector.extract_strided_slice %15 {offsets = [5, 0], sizes = [1, 32], strides = [1, 1]} : vector<13x32xf32> to vector<1x32xf32>
    %82 = vector.extract_strided_slice %15 {offsets = [9, 0], sizes = [1, 32], strides = [1, 1]} : vector<13x32xf32> to vector<1x32xf32>
    %cst_48 = arith.constant dense<0.000000e+00> : vector<1xf32>
    %83 = vector.multi_reduction <add>, %80, %cst_48 [1] : vector<1x32xf32> to vector<1xf32>
    %84 = vector.shape_cast %83 : vector<1xf32> to vector<1x1xf32>
    %cst_49 = arith.constant 3.200000e+01 : f32
    %85 = vector.broadcast %cst_49 : f32 to vector<1x1xf32>
    %86 = arith.divf %84, %85 : vector<1x1xf32>
    %87 = vector.broadcast %86 : vector<1x1xf32> to vector<1x32xf32>
    %88 = arith.subf %80, %87 : vector<1x32xf32>
    %89 = arith.mulf %88, %88 : vector<1x32xf32>
    %cst_50 = arith.constant dense<0.000000e+00> : vector<1xf32>
    %90 = vector.multi_reduction <add>, %89, %cst_50 [1] : vector<1x32xf32> to vector<1xf32>
    %91 = vector.shape_cast %90 : vector<1xf32> to vector<1x1xf32>
    %cst_51 = arith.constant 3.200000e+01 : f32
    %92 = vector.broadcast %cst_51 : f32 to vector<1x1xf32>
    %93 = arith.divf %91, %92 : vector<1x1xf32>
    %cst_52 = arith.constant 9.99999974E-6 : f32
    %94 = vector.broadcast %cst_52 : f32 to vector<1x1xf32>
    %95 = arith.addf %93, %94 : vector<1x1xf32>
    %96 = math.rsqrt %95 : vector<1x1xf32>
    %97 = vector.broadcast %96 : vector<1x1xf32> to vector<1x32xf32>
    %98 = arith.mulf %88, %97 : vector<1x32xf32>
    %99 = arith.mulf %98, %81 : vector<1x32xf32>
    %100 = arith.addf %99, %82 : vector<1x32xf32>
    %101 = vector.extract_strided_slice %21 {offsets = [0, 0, 0], sizes = [1, 32, 64], strides = [1, 1, 1]} : vector<2x32x64xf32> to vector<1x32x64xf32>
    %102 = vector.shape_cast %101 : vector<1x32x64xf32> to vector<32x64xf32>
    %cst_53 = arith.constant dense<0.000000e+00> : vector<1x64xf32>
    %103 = tpu.matmul %100, %102, %cst_53 {dimension_numbers = #tpu.dot_dimension_numbers<[1], [0], [0], [1], [0, 0, 1, 1], [], []>} : vector<1x32xf32>, vector<32x64xf32>, vector<1x64xf32> -> vector<1x64xf32>
    %104 = vector.extract_strided_slice %25 {offsets = [0, 0], sizes = [1, 64], strides = [1, 1]} : vector<2x64xf32> to vector<1x64xf32>
    %105 = arith.addf %103, %104 : vector<1x64xf32>
    %cst_54 = arith.constant 5.000000e-01 : f32
    %106 = vector.broadcast %cst_54 : f32 to vector<1x64xf32>
    %107 = arith.mulf %106, %105 : vector<1x64xf32>
    %cst_55 = arith.constant 0.707106769 : f32
    %108 = vector.broadcast %cst_55 : f32 to vector<1x64xf32>
    %109 = arith.mulf %105, %108 : vector<1x64xf32>
    %110 = math.erf %109 : vector<1x64xf32>
    %cst_56 = arith.constant 1.000000e+00 : f32
    %111 = vector.broadcast %cst_56 : f32 to vector<1x64xf32>
    %112 = arith.addf %111, %110 : vector<1x64xf32>
    %113 = arith.mulf %107, %112 : vector<1x64xf32>
    %114 = vector.extract_strided_slice %23 {offsets = [0, 0, 0], sizes = [1, 64, 32], strides = [1, 1, 1]} : vector<2x64x32xf32> to vector<1x64x32xf32>
    %115 = vector.shape_cast %114 : vector<1x64x32xf32> to vector<64x32xf32>
    %cst_57 = arith.constant dense<0.000000e+00> : vector<1x32xf32>
    %116 = tpu.matmul %113, %115, %cst_57 {dimension_numbers = #tpu.dot_dimension_numbers<[1], [0], [0], [1], [0, 0, 1, 1], [], []>} : vector<1x64xf32>, vector<64x32xf32>, vector<1x32xf32> -> vector<1x32xf32>
    %117 = vector.extract_strided_slice %15 {offsets = [3, 0], sizes = [1, 32], strides = [1, 1]} : vector<13x32xf32> to vector<1x32xf32>
    %118 = arith.addf %116, %117 : vector<1x32xf32>
    %119 = arith.addf %118, %100 : vector<1x32xf32>
    %120 = vector.extract_strided_slice %15 {offsets = [6, 0], sizes = [1, 32], strides = [1, 1]} : vector<13x32xf32> to vector<1x32xf32>
    %121 = vector.extract_strided_slice %15 {offsets = [10, 0], sizes = [1, 32], strides = [1, 1]} : vector<13x32xf32> to vector<1x32xf32>
    %cst_58 = arith.constant dense<0.000000e+00> : vector<1xf32>
    %122 = vector.multi_reduction <add>, %119, %cst_58 [1] : vector<1x32xf32> to vector<1xf32>
    %123 = vector.shape_cast %122 : vector<1xf32> to vector<1x1xf32>
    %cst_59 = arith.constant 3.200000e+01 : f32
    %124 = vector.broadcast %cst_59 : f32 to vector<1x1xf32>
    %125 = arith.divf %123, %124 : vector<1x1xf32>
    %126 = vector.broadcast %125 : vector<1x1xf32> to vector<1x32xf32>
    %127 = arith.subf %119, %126 : vector<1x32xf32>
    %128 = arith.mulf %127, %127 : vector<1x32xf32>
    %cst_60 = arith.constant dense<0.000000e+00> : vector<1xf32>
    %129 = vector.multi_reduction <add>, %128, %cst_60 [1] : vector<1x32xf32> to vector<1xf32>
    %130 = vector.shape_cast %129 : vector<1xf32> to vector<1x1xf32>
    %cst_61 = arith.constant 3.200000e+01 : f32
    %131 = vector.broadcast %cst_61 : f32 to vector<1x1xf32>
    %132 = arith.divf %130, %131 : vector<1x1xf32>
    %cst_62 = arith.constant 9.99999974E-6 : f32
    %133 = vector.broadcast %cst_62 : f32 to vector<1x1xf32>
    %134 = arith.addf %132, %133 : vector<1x1xf32>
    %135 = math.rsqrt %134 : vector<1x1xf32>
    %136 = vector.broadcast %135 : vector<1x1xf32> to vector<1x32xf32>
    %137 = arith.mulf %127, %136 : vector<1x32xf32>
    %138 = arith.mulf %137, %120 : vector<1x32xf32>
    %139 = arith.addf %138, %121 : vector<1x32xf32>
    %140 = vector.shape_cast %43 : vector<8x32xf32> to vector<1x8x32xf32>
    %141 = vector.shape_cast %139 : vector<1x32xf32> to vector<1x1x32xf32>
    %142 = vector.broadcast %141 : vector<1x1x32xf32> to vector<1x8x32xf32>
    %143 = arith.addf %140, %142 : vector<1x8x32xf32>
    %144 = vector.extract_strided_slice %15 {offsets = [7, 0], sizes = [1, 32], strides = [1, 1]} : vector<13x32xf32> to vector<1x32xf32>
    %145 = vector.extract_strided_slice %15 {offsets = [11, 0], sizes = [1, 32], strides = [1, 1]} : vector<13x32xf32> to vector<1x32xf32>
    %cst_63 = arith.constant dense<0.000000e+00> : vector<1x8xf32>
    %146 = vector.multi_reduction <add>, %143, %cst_63 [2] : vector<1x8x32xf32> to vector<1x8xf32>
    %147 = vector.shape_cast %146 : vector<1x8xf32> to vector<1x8x1xf32>
    %cst_64 = arith.constant 3.200000e+01 : f32
    %148 = vector.broadcast %cst_64 : f32 to vector<1x8x1xf32>
    %149 = arith.divf %147, %148 : vector<1x8x1xf32>
    %150 = vector.broadcast %149 : vector<1x8x1xf32> to vector<1x8x32xf32>
    %151 = arith.subf %143, %150 : vector<1x8x32xf32>
    %152 = arith.mulf %151, %151 : vector<1x8x32xf32>
    %cst_65 = arith.constant dense<0.000000e+00> : vector<1x8xf32>
    %153 = vector.multi_reduction <add>, %152, %cst_65 [2] : vector<1x8x32xf32> to vector<1x8xf32>
    %154 = vector.shape_cast %153 : vector<1x8xf32> to vector<1x8x1xf32>
    %cst_66 = arith.constant 3.200000e+01 : f32
    %155 = vector.broadcast %cst_66 : f32 to vector<1x8x1xf32>
    %156 = arith.divf %154, %155 : vector<1x8x1xf32>
    %cst_67 = arith.constant 9.99999974E-6 : f32
    %157 = vector.broadcast %cst_67 : f32 to vector<1x8x1xf32>
    %158 = arith.addf %156, %157 : vector<1x8x1xf32>
    %159 = math.rsqrt %158 : vector<1x8x1xf32>
    %160 = vector.broadcast %159 : vector<1x8x1xf32> to vector<1x8x32xf32>
    %161 = arith.mulf %151, %160 : vector<1x8x32xf32>
    %162 = vector.shape_cast %144 : vector<1x32xf32> to vector<1x1x32xf32>
    %163 = vector.broadcast %162 : vector<1x1x32xf32> to vector<1x8x32xf32>
    %164 = arith.mulf %161, %163 : vector<1x8x32xf32>
    %165 = vector.shape_cast %145 : vector<1x32xf32> to vector<1x1x32xf32>
    %166 = vector.broadcast %165 : vector<1x1x32xf32> to vector<1x8x32xf32>
    %167 = arith.addf %164, %166 : vector<1x8x32xf32>
    %168 = vector.shape_cast %167 : vector<1x8x32xf32> to vector<8x32xf32>
    %169 = vector.extract_strided_slice %21 {offsets = [1, 0, 0], sizes = [1, 32, 64], strides = [1, 1, 1]} : vector<2x32x64xf32> to vector<1x32x64xf32>
    %170 = vector.shape_cast %169 : vector<1x32x64xf32> to vector<32x64xf32>
    %cst_68 = arith.constant dense<0.000000e+00> : vector<8x64xf32>
    %171 = tpu.matmul %168, %170, %cst_68 {dimension_numbers = #tpu.dot_dimension_numbers<[1], [0], [0], [1], [0, 0, 1, 1], [], []>} : vector<8x32xf32>, vector<32x64xf32>, vector<8x64xf32> -> vector<8x64xf32>
    %172 = vector.extract_strided_slice %25 {offsets = [1, 0], sizes = [1, 64], strides = [1, 1]} : vector<2x64xf32> to vector<1x64xf32>
    %173 = vector.broadcast %172 : vector<1x64xf32> to vector<8x64xf32>
    %174 = arith.addf %171, %173 : vector<8x64xf32>
    %cst_69 = arith.constant 5.000000e-01 : f32
    %175 = vector.broadcast %cst_69 : f32 to vector<8x64xf32>
    %176 = arith.mulf %175, %174 : vector<8x64xf32>
    %cst_70 = arith.constant 0.707106769 : f32
    %177 = vector.broadcast %cst_70 : f32 to vector<8x64xf32>
    %178 = arith.mulf %174, %177 : vector<8x64xf32>
    %179 = math.erf %178 : vector<8x64xf32>
    %cst_71 = arith.constant 1.000000e+00 : f32
    %180 = vector.broadcast %cst_71 : f32 to vector<8x64xf32>
    %181 = arith.addf %180, %179 : vector<8x64xf32>
    %182 = arith.mulf %176, %181 : vector<8x64xf32>
    %183 = vector.extract_strided_slice %23 {offsets = [1, 0, 0], sizes = [1, 64, 32], strides = [1, 1, 1]} : vector<2x64x32xf32> to vector<1x64x32xf32>
    %184 = vector.shape_cast %183 : vector<1x64x32xf32> to vector<64x32xf32>
    %cst_72 = arith.constant dense<0.000000e+00> : vector<8x32xf32>
    %185 = tpu.matmul %182, %184, %cst_72 {dimension_numbers = #tpu.dot_dimension_numbers<[1], [0], [0], [1], [0, 0, 1, 1], [], []>} : vector<8x64xf32>, vector<64x32xf32>, vector<8x32xf32> -> vector<8x32xf32>
    %186 = vector.extract_strided_slice %15 {offsets = [4, 0], sizes = [1, 32], strides = [1, 1]} : vector<13x32xf32> to vector<1x32xf32>
    %187 = vector.broadcast %186 : vector<1x32xf32> to vector<8x32xf32>
    %188 = arith.addf %185, %187 : vector<8x32xf32>
    %189 = arith.addf %168, %188 : vector<8x32xf32>
    %190 = vector.extract_strided_slice %15 {offsets = [8, 0], sizes = [1, 32], strides = [1, 1]} : vector<13x32xf32> to vector<1x32xf32>
    %191 = vector.extract_strided_slice %15 {offsets = [12, 0], sizes = [1, 32], strides = [1, 1]} : vector<13x32xf32> to vector<1x32xf32>
    %cst_73 = arith.constant dense<0.000000e+00> : vector<8xf32>
    %192 = vector.multi_reduction <add>, %189, %cst_73 [1] : vector<8x32xf32> to vector<8xf32>
    %193 = vector.shape_cast %192 : vector<8xf32> to vector<8x1xf32>
    %cst_74 = arith.constant 3.200000e+01 : f32
    %194 = vector.broadcast %cst_74 : f32 to vector<8x1xf32>
    %195 = arith.divf %193, %194 : vector<8x1xf32>
    %196 = vector.broadcast %195 : vector<8x1xf32> to vector<8x32xf32>
    %197 = arith.subf %189, %196 : vector<8x32xf32>
    %198 = arith.mulf %197, %197 : vector<8x32xf32>
    %cst_75 = arith.constant dense<0.000000e+00> : vector<8xf32>
    %199 = vector.multi_reduction <add>, %198, %cst_75 [1] : vector<8x32xf32> to vector<8xf32>
    %200 = vector.shape_cast %199 : vector<8xf32> to vector<8x1xf32>
    %cst_76 = arith.constant 3.200000e+01 : f32
    %201 = vector.broadcast %cst_76 : f32 to vector<8x1xf32>
    %202 = arith.divf %200, %201 : vector<8x1xf32>
    %cst_77 = arith.constant 9.99999974E-6 : f32
    %203 = vector.broadcast %cst_77 : f32 to vector<8x1xf32>
    %204 = arith.addf %202, %203 : vector<8x1xf32>
    %205 = math.rsqrt %204 : vector<8x1xf32>
    %206 = vector.broadcast %205 : vector<8x1xf32> to vector<8x32xf32>
    %207 = arith.mulf %197, %206 : vector<8x32xf32>
    %208 = vector.broadcast %190 : vector<1x32xf32> to vector<8x32xf32>
    %209 = arith.mulf %207, %208 : vector<8x32xf32>
    %210 = vector.broadcast %191 : vector<1x32xf32> to vector<8x32xf32>
    %211 = arith.addf %209, %210 : vector<8x32xf32>
    %c1 = arith.constant 1 : index
    %c0_78 = arith.constant 0 : index
    %c0_79 = arith.constant 0 : index
    %c0_80 = arith.constant 0 : index
    %212 = vector.load %arg7[%c1, %c0_78, %c0_79, %c0_80] : memref<2x3x32x32xf32, #tpu.memory_space<vmem>>, vector<1x3x32x32xf32>
    %213 = vector.shape_cast %212 : vector<1x3x32x32xf32> to vector<3x32x32xf32>
    %c1_81 = arith.constant 1 : index
    %c0_82 = arith.constant 0 : index
    %c0_83 = arith.constant 0 : index
    %214 = vector.load %arg10[%c1_81, %c0_82, %c0_83] : memref<2x13x32xf32, #tpu.memory_space<vmem>>, vector<1x13x32xf32>
    %215 = vector.shape_cast %214 : vector<1x13x32xf32> to vector<13x32xf32>
    %c1_84 = arith.constant 1 : index
    %c0_85 = arith.constant 0 : index
    %c0_86 = arith.constant 0 : index
    %216 = vector.load %arg8[%c1_84, %c0_85, %c0_86] : memref<2x32x64xf32, #tpu.memory_space<vmem>>, vector<1x32x64xf32>
    %217 = vector.shape_cast %216 : vector<1x32x64xf32> to vector<32x64xf32>
    %c1_87 = arith.constant 1 : index
    %c0_88 = arith.constant 0 : index
    %c0_89 = arith.constant 0 : index
    %218 = vector.load %arg9[%c1_87, %c0_88, %c0_89] : memref<2x1x64xf32, #tpu.memory_space<vmem>>, vector<1x1x64xf32>
    %219 = vector.shape_cast %218 : vector<1x1x64xf32> to vector<1x64xf32>
    %c1_90 = arith.constant 1 : index
    %c0_91 = arith.constant 0 : index
    %c0_92 = arith.constant 0 : index
    %c0_93 = arith.constant 0 : index
    %220 = vector.load %arg11[%c1_90, %c0_91, %c0_92, %c0_93] : memref<2x2x32x64xf32, #tpu.memory_space<vmem>>, vector<1x2x32x64xf32>
    %221 = vector.shape_cast %220 : vector<1x2x32x64xf32> to vector<2x32x64xf32>
    %c1_94 = arith.constant 1 : index
    %c0_95 = arith.constant 0 : index
    %c0_96 = arith.constant 0 : index
    %c0_97 = arith.constant 0 : index
    %222 = vector.load %arg12[%c1_94, %c0_95, %c0_96, %c0_97] : memref<2x2x64x32xf32, #tpu.memory_space<vmem>>, vector<1x2x64x32xf32>
    %223 = vector.shape_cast %222 : vector<1x2x64x32xf32> to vector<2x64x32xf32>
    %c1_98 = arith.constant 1 : index
    %c0_99 = arith.constant 0 : index
    %c0_100 = arith.constant 0 : index
    %224 = vector.load %arg13[%c1_98, %c0_99, %c0_100] : memref<2x2x64xf32, #tpu.memory_space<vmem>>, vector<1x2x64xf32>
    %225 = vector.shape_cast %224 : vector<1x2x64xf32> to vector<2x64xf32>
    %226 = vector.extract_strided_slice %3 {offsets = [0, 1, 0], sizes = [1, 1, 32], strides = [1, 1, 1]} : vector<1x3x32xf32> to vector<1x1x32xf32>
    %227 = vector.shape_cast %226 : vector<1x1x32xf32> to vector<1x32xf32>
    %228 = vector.extract_strided_slice %213 {offsets = [0, 0, 0], sizes = [1, 32, 32], strides = [1, 1, 1]} : vector<3x32x32xf32> to vector<1x32x32xf32>
    %229 = vector.shape_cast %228 : vector<1x32x32xf32> to vector<32x32xf32>
    %cst_101 = arith.constant dense<0.000000e+00> : vector<8x32xf32>
    %230 = tpu.matmul %211, %229, %cst_101 {dimension_numbers = #tpu.dot_dimension_numbers<[1], [0], [0], [1], [0, 0, 1, 1], [], []>} : vector<8x32xf32>, vector<32x32xf32>, vector<8x32xf32> -> vector<8x32xf32>
    %231 = vector.shape_cast %230 : vector<8x32xf32> to vector<1x8x32xf32>
    %232 = vector.shape_cast %227 : vector<1x32xf32> to vector<1x1x32xf32>
    %233 = vector.broadcast %232 : vector<1x1x32xf32> to vector<1x8x32xf32>
    %234 = arith.addf %231, %233 : vector<1x8x32xf32>
    %235 = vector.shape_cast %234 : vector<1x8x32xf32> to vector<8x32xf32>
    %cst_102 = arith.constant 0.000000e+00 : f32
    %236 = vector.broadcast %cst_102 : f32 to vector<8x32xf32>
    %237 = arith.maximumf %235, %236 : vector<8x32xf32>
    %238 = vector.extract_strided_slice %213 {offsets = [1, 0, 0], sizes = [1, 32, 32], strides = [1, 1, 1]} : vector<3x32x32xf32> to vector<1x32x32xf32>
    %239 = vector.shape_cast %238 : vector<1x32x32xf32> to vector<32x32xf32>
    %cst_103 = arith.constant dense<0.000000e+00> : vector<8x32xf32>
    %240 = tpu.matmul %237, %239, %cst_103 {dimension_numbers = #tpu.dot_dimension_numbers<[1], [0], [0], [1], [0, 0, 1, 1], [], []>} : vector<8x32xf32>, vector<32x32xf32>, vector<8x32xf32> -> vector<8x32xf32>
    %241 = vector.extract_strided_slice %215 {offsets = [1, 0], sizes = [1, 32], strides = [1, 1]} : vector<13x32xf32> to vector<1x32xf32>
    %242 = vector.broadcast %241 : vector<1x32xf32> to vector<8x32xf32>
    %243 = arith.addf %240, %242 : vector<8x32xf32>
    %244 = vector.extract_strided_slice %215 {offsets = [0, 0], sizes = [1, 32], strides = [1, 1]} : vector<13x32xf32> to vector<1x32xf32>
    %cst_104 = arith.constant dense<0.000000e+00> : vector<8x64xf32>
    %245 = tpu.matmul %243, %217, %cst_104 {dimension_numbers = #tpu.dot_dimension_numbers<[1], [0], [0], [1], [0, 0, 1, 1], [], []>} : vector<8x32xf32>, vector<32x64xf32>, vector<8x64xf32> -> vector<8x64xf32>
    %246 = vector.broadcast %219 : vector<1x64xf32> to vector<8x64xf32>
    %247 = arith.addf %245, %246 : vector<8x64xf32>
    %248 = vector.extract_strided_slice %247 {offsets = [0, 0], sizes = [8, 32], strides = [1, 1]} : vector<8x64xf32> to vector<8x32xf32>
    %249 = vector.extract_strided_slice %247 {offsets = [0, 32], sizes = [8, 32], strides = [1, 1]} : vector<8x64xf32> to vector<8x32xf32>
    %250 = vector.broadcast %244 : vector<1x32xf32> to vector<8x32xf32>
    %251 = arith.mulf %248, %250 : vector<8x32xf32>
    %cst_105 = arith.constant dense<0.000000e+00> : vector<8x4xf32>
    %252 = tpu.matmul %251, %5, %cst_105 {dimension_numbers = #tpu.dot_dimension_numbers<[1], [0], [0], [1], [0, 0, 1, 1], [], []>} : vector<8x32xf32>, vector<32x4xf32>, vector<8x4xf32> -> vector<8x4xf32>
    %cst_106 = arith.constant 0.353553385 : f32
    %253 = vector.broadcast %cst_106 : f32 to vector<8x4xf32>
    %254 = arith.mulf %252, %253 : vector<8x4xf32>
    %255 = vector.shape_cast %254 : vector<8x4xf32> to vector<1x8x4xf32>
    %256 = vector.broadcast %2 : vector<1x8x1xf32> to vector<1x8x4xf32>
    %257 = arith.addf %255, %256 : vector<1x8x4xf32>
    %cst_107 = arith.constant dense<0xFF800000> : vector<1x4xf32>
    %258 = vector.multi_reduction <maximumf>, %257, %cst_107 [1] : vector<1x8x4xf32> to vector<1x4xf32>
    %259 = vector.shape_cast %258 : vector<1x4xf32> to vector<1x1x4xf32>
    %260 = vector.broadcast %259 : vector<1x1x4xf32> to vector<1x8x4xf32>
    %261 = arith.subf %257, %260 : vector<1x8x4xf32>
    %262 = math.exp %261 : vector<1x8x4xf32>
    %cst_108 = arith.constant dense<0.000000e+00> : vector<1x4xf32>
    %263 = vector.multi_reduction <add>, %262, %cst_108 [1] : vector<1x8x4xf32> to vector<1x4xf32>
    %264 = vector.shape_cast %263 : vector<1x4xf32> to vector<1x1x4xf32>
    %265 = vector.broadcast %264 : vector<1x1x4xf32> to vector<1x8x4xf32>
    %266 = arith.divf %262, %265 : vector<1x8x4xf32>
    %267 = vector.shape_cast %266 : vector<1x8x4xf32> to vector<8x4xf32>
    %268 = vector.shape_cast %267 : vector<8x4xf32> to vector<8x4x1xf32>
    %269 = vector.shape_cast %268 : vector<8x4x1xf32> to vector<8x4x1xf32>
    %270 = vector.broadcast %269 : vector<8x4x1xf32> to vector<8x4x8xf32>
    %271 = vector.shape_cast %270 : vector<8x4x8xf32> to vector<8x32xf32>
    %272 = arith.mulf %271, %249 : vector<8x32xf32>
    %273 = vector.shape_cast %272 : vector<8x32xf32> to vector<1x8x32xf32>
    %cst_109 = arith.constant dense<0.000000e+00> : vector<1x32xf32>
    %274 = vector.multi_reduction <add>, %273, %cst_109 [1] : vector<1x8x32xf32> to vector<1x32xf32>
    %275 = vector.extract_strided_slice %213 {offsets = [2, 0, 0], sizes = [1, 32, 32], strides = [1, 1, 1]} : vector<3x32x32xf32> to vector<1x32x32xf32>
    %276 = vector.shape_cast %275 : vector<1x32x32xf32> to vector<32x32xf32>
    %cst_110 = arith.constant dense<0.000000e+00> : vector<1x32xf32>
    %277 = tpu.matmul %274, %276, %cst_110 {dimension_numbers = #tpu.dot_dimension_numbers<[1], [0], [0], [1], [0, 0, 1, 1], [], []>} : vector<1x32xf32>, vector<32x32xf32>, vector<1x32xf32> -> vector<1x32xf32>
    %278 = vector.extract_strided_slice %215 {offsets = [2, 0], sizes = [1, 32], strides = [1, 1]} : vector<13x32xf32> to vector<1x32xf32>
    %279 = arith.addf %277, %278 : vector<1x32xf32>
    %280 = arith.addf %6, %279 : vector<1x32xf32>
    %281 = vector.extract_strided_slice %215 {offsets = [5, 0], sizes = [1, 32], strides = [1, 1]} : vector<13x32xf32> to vector<1x32xf32>
    %282 = vector.extract_strided_slice %215 {offsets = [9, 0], sizes = [1, 32], strides = [1, 1]} : vector<13x32xf32> to vector<1x32xf32>
    %cst_111 = arith.constant dense<0.000000e+00> : vector<1xf32>
    %283 = vector.multi_reduction <add>, %280, %cst_111 [1] : vector<1x32xf32> to vector<1xf32>
    %284 = vector.shape_cast %283 : vector<1xf32> to vector<1x1xf32>
    %cst_112 = arith.constant 3.200000e+01 : f32
    %285 = vector.broadcast %cst_112 : f32 to vector<1x1xf32>
    %286 = arith.divf %284, %285 : vector<1x1xf32>
    %287 = vector.broadcast %286 : vector<1x1xf32> to vector<1x32xf32>
    %288 = arith.subf %280, %287 : vector<1x32xf32>
    %289 = arith.mulf %288, %288 : vector<1x32xf32>
    %cst_113 = arith.constant dense<0.000000e+00> : vector<1xf32>
    %290 = vector.multi_reduction <add>, %289, %cst_113 [1] : vector<1x32xf32> to vector<1xf32>
    %291 = vector.shape_cast %290 : vector<1xf32> to vector<1x1xf32>
    %cst_114 = arith.constant 3.200000e+01 : f32
    %292 = vector.broadcast %cst_114 : f32 to vector<1x1xf32>
    %293 = arith.divf %291, %292 : vector<1x1xf32>
    %cst_115 = arith.constant 9.99999974E-6 : f32
    %294 = vector.broadcast %cst_115 : f32 to vector<1x1xf32>
    %295 = arith.addf %293, %294 : vector<1x1xf32>
    %296 = math.rsqrt %295 : vector<1x1xf32>
    %297 = vector.broadcast %296 : vector<1x1xf32> to vector<1x32xf32>
    %298 = arith.mulf %288, %297 : vector<1x32xf32>
    %299 = arith.mulf %298, %281 : vector<1x32xf32>
    %300 = arith.addf %299, %282 : vector<1x32xf32>
    %301 = vector.extract_strided_slice %221 {offsets = [0, 0, 0], sizes = [1, 32, 64], strides = [1, 1, 1]} : vector<2x32x64xf32> to vector<1x32x64xf32>
    %302 = vector.shape_cast %301 : vector<1x32x64xf32> to vector<32x64xf32>
    %cst_116 = arith.constant dense<0.000000e+00> : vector<1x64xf32>
    %303 = tpu.matmul %300, %302, %cst_116 {dimension_numbers = #tpu.dot_dimension_numbers<[1], [0], [0], [1], [0, 0, 1, 1], [], []>} : vector<1x32xf32>, vector<32x64xf32>, vector<1x64xf32> -> vector<1x64xf32>
    %304 = vector.extract_strided_slice %225 {offsets = [0, 0], sizes = [1, 64], strides = [1, 1]} : vector<2x64xf32> to vector<1x64xf32>
    %305 = arith.addf %303, %304 : vector<1x64xf32>
    %cst_117 = arith.constant 5.000000e-01 : f32
    %306 = vector.broadcast %cst_117 : f32 to vector<1x64xf32>
    %307 = arith.mulf %306, %305 : vector<1x64xf32>
    %cst_118 = arith.constant 0.707106769 : f32
    %308 = vector.broadcast %cst_118 : f32 to vector<1x64xf32>
    %309 = arith.mulf %305, %308 : vector<1x64xf32>
    %310 = math.erf %309 : vector<1x64xf32>
    %cst_119 = arith.constant 1.000000e+00 : f32
    %311 = vector.broadcast %cst_119 : f32 to vector<1x64xf32>
    %312 = arith.addf %311, %310 : vector<1x64xf32>
    %313 = arith.mulf %307, %312 : vector<1x64xf32>
    %314 = vector.extract_strided_slice %223 {offsets = [0, 0, 0], sizes = [1, 64, 32], strides = [1, 1, 1]} : vector<2x64x32xf32> to vector<1x64x32xf32>
    %315 = vector.shape_cast %314 : vector<1x64x32xf32> to vector<64x32xf32>
    %cst_120 = arith.constant dense<0.000000e+00> : vector<1x32xf32>
    %316 = tpu.matmul %313, %315, %cst_120 {dimension_numbers = #tpu.dot_dimension_numbers<[1], [0], [0], [1], [0, 0, 1, 1], [], []>} : vector<1x64xf32>, vector<64x32xf32>, vector<1x32xf32> -> vector<1x32xf32>
    %317 = vector.extract_strided_slice %215 {offsets = [3, 0], sizes = [1, 32], strides = [1, 1]} : vector<13x32xf32> to vector<1x32xf32>
    %318 = arith.addf %316, %317 : vector<1x32xf32>
    %319 = arith.addf %318, %300 : vector<1x32xf32>
    %320 = vector.extract_strided_slice %215 {offsets = [6, 0], sizes = [1, 32], strides = [1, 1]} : vector<13x32xf32> to vector<1x32xf32>
    %321 = vector.extract_strided_slice %215 {offsets = [10, 0], sizes = [1, 32], strides = [1, 1]} : vector<13x32xf32> to vector<1x32xf32>
    %cst_121 = arith.constant dense<0.000000e+00> : vector<1xf32>
    %322 = vector.multi_reduction <add>, %319, %cst_121 [1] : vector<1x32xf32> to vector<1xf32>
    %323 = vector.shape_cast %322 : vector<1xf32> to vector<1x1xf32>
    %cst_122 = arith.constant 3.200000e+01 : f32
    %324 = vector.broadcast %cst_122 : f32 to vector<1x1xf32>
    %325 = arith.divf %323, %324 : vector<1x1xf32>
    %326 = vector.broadcast %325 : vector<1x1xf32> to vector<1x32xf32>
    %327 = arith.subf %319, %326 : vector<1x32xf32>
    %328 = arith.mulf %327, %327 : vector<1x32xf32>
    %cst_123 = arith.constant dense<0.000000e+00> : vector<1xf32>
    %329 = vector.multi_reduction <add>, %328, %cst_123 [1] : vector<1x32xf32> to vector<1xf32>
    %330 = vector.shape_cast %329 : vector<1xf32> to vector<1x1xf32>
    %cst_124 = arith.constant 3.200000e+01 : f32
    %331 = vector.broadcast %cst_124 : f32 to vector<1x1xf32>
    %332 = arith.divf %330, %331 : vector<1x1xf32>
    %cst_125 = arith.constant 9.99999974E-6 : f32
    %333 = vector.broadcast %cst_125 : f32 to vector<1x1xf32>
    %334 = arith.addf %332, %333 : vector<1x1xf32>
    %335 = math.rsqrt %334 : vector<1x1xf32>
    %336 = vector.broadcast %335 : vector<1x1xf32> to vector<1x32xf32>
    %337 = arith.mulf %327, %336 : vector<1x32xf32>
    %338 = arith.mulf %337, %320 : vector<1x32xf32>
    %339 = arith.addf %338, %321 : vector<1x32xf32>
    %340 = vector.shape_cast %243 : vector<8x32xf32> to vector<1x8x32xf32>
    %341 = vector.shape_cast %339 : vector<1x32xf32> to vector<1x1x32xf32>
    %342 = vector.broadcast %341 : vector<1x1x32xf32> to vector<1x8x32xf32>
    %343 = arith.addf %340, %342 : vector<1x8x32xf32>
    %344 = vector.extract_strided_slice %215 {offsets = [7, 0], sizes = [1, 32], strides = [1, 1]} : vector<13x32xf32> to vector<1x32xf32>
    %345 = vector.extract_strided_slice %215 {offsets = [11, 0], sizes = [1, 32], strides = [1, 1]} : vector<13x32xf32> to vector<1x32xf32>
    %cst_126 = arith.constant dense<0.000000e+00> : vector<1x8xf32>
    %346 = vector.multi_reduction <add>, %343, %cst_126 [2] : vector<1x8x32xf32> to vector<1x8xf32>
    %347 = vector.shape_cast %346 : vector<1x8xf32> to vector<1x8x1xf32>
    %cst_127 = arith.constant 3.200000e+01 : f32
    %348 = vector.broadcast %cst_127 : f32 to vector<1x8x1xf32>
    %349 = arith.divf %347, %348 : vector<1x8x1xf32>
    %350 = vector.broadcast %349 : vector<1x8x1xf32> to vector<1x8x32xf32>
    %351 = arith.subf %343, %350 : vector<1x8x32xf32>
    %352 = arith.mulf %351, %351 : vector<1x8x32xf32>
    %cst_128 = arith.constant dense<0.000000e+00> : vector<1x8xf32>
    %353 = vector.multi_reduction <add>, %352, %cst_128 [2] : vector<1x8x32xf32> to vector<1x8xf32>
    %354 = vector.shape_cast %353 : vector<1x8xf32> to vector<1x8x1xf32>
    %cst_129 = arith.constant 3.200000e+01 : f32
    %355 = vector.broadcast %cst_129 : f32 to vector<1x8x1xf32>
    %356 = arith.divf %354, %355 : vector<1x8x1xf32>
    %cst_130 = arith.constant 9.99999974E-6 : f32
    %357 = vector.broadcast %cst_130 : f32 to vector<1x8x1xf32>
    %358 = arith.addf %356, %357 : vector<1x8x1xf32>
    %359 = math.rsqrt %358 : vector<1x8x1xf32>
    %360 = vector.broadcast %359 : vector<1x8x1xf32> to vector<1x8x32xf32>
    %361 = arith.mulf %351, %360 : vector<1x8x32xf32>
    %362 = vector.shape_cast %344 : vector<1x32xf32> to vector<1x1x32xf32>
    %363 = vector.broadcast %362 : vector<1x1x32xf32> to vector<1x8x32xf32>
    %364 = arith.mulf %361, %363 : vector<1x8x32xf32>
    %365 = vector.shape_cast %345 : vector<1x32xf32> to vector<1x1x32xf32>
    %366 = vector.broadcast %365 : vector<1x1x32xf32> to vector<1x8x32xf32>
    %367 = arith.addf %364, %366 : vector<1x8x32xf32>
    %368 = vector.shape_cast %367 : vector<1x8x32xf32> to vector<8x32xf32>
    %369 = vector.extract_strided_slice %221 {offsets = [1, 0, 0], sizes = [1, 32, 64], strides = [1, 1, 1]} : vector<2x32x64xf32> to vector<1x32x64xf32>
    %370 = vector.shape_cast %369 : vector<1x32x64xf32> to vector<32x64xf32>
    %cst_131 = arith.constant dense<0.000000e+00> : vector<8x64xf32>
    %371 = tpu.matmul %368, %370, %cst_131 {dimension_numbers = #tpu.dot_dimension_numbers<[1], [0], [0], [1], [0, 0, 1, 1], [], []>} : vector<8x32xf32>, vector<32x64xf32>, vector<8x64xf32> -> vector<8x64xf32>
    %372 = vector.extract_strided_slice %225 {offsets = [1, 0], sizes = [1, 64], strides = [1, 1]} : vector<2x64xf32> to vector<1x64xf32>
    %373 = vector.broadcast %372 : vector<1x64xf32> to vector<8x64xf32>
    %374 = arith.addf %371, %373 : vector<8x64xf32>
    %cst_132 = arith.constant 5.000000e-01 : f32
    %375 = vector.broadcast %cst_132 : f32 to vector<8x64xf32>
    %376 = arith.mulf %375, %374 : vector<8x64xf32>
    %cst_133 = arith.constant 0.707106769 : f32
    %377 = vector.broadcast %cst_133 : f32 to vector<8x64xf32>
    %378 = arith.mulf %374, %377 : vector<8x64xf32>
    %379 = math.erf %378 : vector<8x64xf32>
    %cst_134 = arith.constant 1.000000e+00 : f32
    %380 = vector.broadcast %cst_134 : f32 to vector<8x64xf32>
    %381 = arith.addf %380, %379 : vector<8x64xf32>
    %382 = arith.mulf %376, %381 : vector<8x64xf32>
    %383 = vector.extract_strided_slice %223 {offsets = [1, 0, 0], sizes = [1, 64, 32], strides = [1, 1, 1]} : vector<2x64x32xf32> to vector<1x64x32xf32>
    %384 = vector.shape_cast %383 : vector<1x64x32xf32> to vector<64x32xf32>
    %cst_135 = arith.constant dense<0.000000e+00> : vector<8x32xf32>
    %385 = tpu.matmul %382, %384, %cst_135 {dimension_numbers = #tpu.dot_dimension_numbers<[1], [0], [0], [1], [0, 0, 1, 1], [], []>} : vector<8x64xf32>, vector<64x32xf32>, vector<8x32xf32> -> vector<8x32xf32>
    %386 = vector.extract_strided_slice %215 {offsets = [4, 0], sizes = [1, 32], strides = [1, 1]} : vector<13x32xf32> to vector<1x32xf32>
    %387 = vector.broadcast %386 : vector<1x32xf32> to vector<8x32xf32>
    %388 = arith.addf %385, %387 : vector<8x32xf32>
    %389 = arith.addf %368, %388 : vector<8x32xf32>
    %390 = vector.extract_strided_slice %215 {offsets = [8, 0], sizes = [1, 32], strides = [1, 1]} : vector<13x32xf32> to vector<1x32xf32>
    %391 = vector.extract_strided_slice %215 {offsets = [12, 0], sizes = [1, 32], strides = [1, 1]} : vector<13x32xf32> to vector<1x32xf32>
    %cst_136 = arith.constant dense<0.000000e+00> : vector<8xf32>
    %392 = vector.multi_reduction <add>, %389, %cst_136 [1] : vector<8x32xf32> to vector<8xf32>
    %393 = vector.shape_cast %392 : vector<8xf32> to vector<8x1xf32>
    %cst_137 = arith.constant 3.200000e+01 : f32
    %394 = vector.broadcast %cst_137 : f32 to vector<8x1xf32>
    %395 = arith.divf %393, %394 : vector<8x1xf32>
    %396 = vector.broadcast %395 : vector<8x1xf32> to vector<8x32xf32>
    %397 = arith.subf %389, %396 : vector<8x32xf32>
    %398 = arith.mulf %397, %397 : vector<8x32xf32>
    %cst_138 = arith.constant dense<0.000000e+00> : vector<8xf32>
    %399 = vector.multi_reduction <add>, %398, %cst_138 [1] : vector<8x32xf32> to vector<8xf32>
    %400 = vector.shape_cast %399 : vector<8xf32> to vector<8x1xf32>
    %cst_139 = arith.constant 3.200000e+01 : f32
    %401 = vector.broadcast %cst_139 : f32 to vector<8x1xf32>
    %402 = arith.divf %400, %401 : vector<8x1xf32>
    %cst_140 = arith.constant 9.99999974E-6 : f32
    %403 = vector.broadcast %cst_140 : f32 to vector<8x1xf32>
    %404 = arith.addf %402, %403 : vector<8x1xf32>
    %405 = math.rsqrt %404 : vector<8x1xf32>
    %406 = vector.broadcast %405 : vector<8x1xf32> to vector<8x32xf32>
    %407 = arith.mulf %397, %406 : vector<8x32xf32>
    %408 = vector.broadcast %390 : vector<1x32xf32> to vector<8x32xf32>
    %409 = arith.mulf %407, %408 : vector<8x32xf32>
    %410 = vector.broadcast %391 : vector<1x32xf32> to vector<8x32xf32>
    %411 = arith.addf %409, %410 : vector<8x32xf32>
    %c0_141 = arith.constant 0 : index
    %c0_142 = arith.constant 0 : index
    %412 = vector.load %arg14[%c0_141, %c0_142] : memref<33x4xf32, #tpu.memory_space<vmem>>, vector<33x4xf32>
    %413 = vector.extract_strided_slice %412 {offsets = [0, 0], sizes = [32, 4], strides = [1, 1]} : vector<33x4xf32> to vector<32x4xf32>
    %cst_143 = arith.constant dense<0.000000e+00> : vector<8x4xf32>
    %414 = tpu.matmul %411, %413, %cst_143 {dimension_numbers = #tpu.dot_dimension_numbers<[1], [0], [0], [1], [0, 0, 1, 1], [], []>} : vector<8x32xf32>, vector<32x4xf32>, vector<8x4xf32> -> vector<8x4xf32>
    %415 = vector.extract_strided_slice %412 {offsets = [32, 0], sizes = [1, 4], strides = [1, 1]} : vector<33x4xf32> to vector<1x4xf32>
    %416 = vector.broadcast %415 : vector<1x4xf32> to vector<8x4xf32>
    %417 = arith.addf %414, %416 : vector<8x4xf32>
    %418 = vector.extract_strided_slice %3 {offsets = [0, 2, 0], sizes = [1, 1, 1], strides = [1, 1, 1]} : vector<1x3x32xf32> to vector<1x1x1xf32>
    %419 = vector.shape_cast %418 : vector<1x1x1xf32> to vector<1x1xf32>
    %420 = vector.shape_cast %417 : vector<8x4xf32> to vector<1x8x4xf32>
    %421 = vector.shape_cast %419 : vector<1x1xf32> to vector<1x1x1xf32>
    %422 = vector.broadcast %421 : vector<1x1x1xf32> to vector<1x8x4xf32>
    %423 = arith.mulf %420, %422 : vector<1x8x4xf32>
    %c0_144 = arith.constant 0 : index
    %c0_145 = arith.constant 0 : index
    %c0_146 = arith.constant 0 : index
    %424 = vector.load %arg15[%c0_144, %c0_145, %c0_146] : memref<1x8x4xf32, #tpu.memory_space<vmem>>, vector<1x8x4xf32>
    tpu.vector_store %arg15[%c0_144, %c0_145, %c0_146], %423 {strides = array<i32>} : memref<1x8x4xf32, #tpu.memory_space<vmem>>, vector<1x8x4xf32>,
    return
  }
  func.func @transform_0(%arg0: i32) -> (i32, i32, i32) {
    %c0_i32 = arith.constant 0 : i32
    %c0_i32_0 = arith.constant 0 : i32
    %c0_i32_1 = arith.constant 0 : i32
    return %arg0, %c0_i32, %c0_i32_0 : i32, i32, i32
  }
  func.func @transform_1(%arg0: i32) -> (i32, i32, i32) {
    %c0_i32 = arith.constant 0 : i32
    %c0_i32_0 = arith.constant 0 : i32
    %c0_i32_1 = arith.constant 0 : i32
    return %arg0, %c0_i32, %c0_i32_0 : i32, i32, i32
  }
  func.func @transform_2(%arg0: i32) -> (i32, i32, i32) {
    %c0_i32 = arith.constant 0 : i32
    %c0_i32_0 = arith.constant 0 : i32
    %c0_i32_1 = arith.constant 0 : i32
    return %arg0, %c0_i32, %c0_i32_0 : i32, i32, i32
  }
  func.func @transform_3(%arg0: i32) -> (i32, i32) {
    %c0_i32 = arith.constant 0 : i32
    %c0_i32_0 = arith.constant 0 : i32
    %c0_i32_1 = arith.constant 0 : i32
    return %c0_i32, %c0_i32_0 : i32, i32
  }
  func.func @transform_4(%arg0: i32) -> (i32, i32) {
    %c0_i32 = arith.constant 0 : i32
    %c0_i32_0 = arith.constant 0 : i32
    %c0_i32_1 = arith.constant 0 : i32
    return %c0_i32, %c0_i32_0 : i32, i32
  }
  func.func @transform_5(%arg0: i32) -> (i32, i32) {
    %c0_i32 = arith.constant 0 : i32
    %c0_i32_0 = arith.constant 0 : i32
    %c0_i32_1 = arith.constant 0 : i32
    return %c0_i32, %c0_i32_0 : i32, i32
  }
  func.func @transform_6(%arg0: i32) -> (i32, i32, i32, i32) {
    %c0_i32 = arith.constant 0 : i32
    %c0_i32_0 = arith.constant 0 : i32
    %c0_i32_1 = arith.constant 0 : i32
    %c0_i32_2 = arith.constant 0 : i32
    %c0_i32_3 = arith.constant 0 : i32
    return %c0_i32, %c0_i32_0, %c0_i32_1, %c0_i32_2 : i32, i32, i32, i32
  }
  func.func @transform_7(%arg0: i32) -> (i32, i32, i32) {
    %c0_i32 = arith.constant 0 : i32
    %c0_i32_0 = arith.constant 0 : i32
    %c0_i32_1 = arith.constant 0 : i32
    %c0_i32_2 = arith.constant 0 : i32
    return %c0_i32, %c0_i32_0, %c0_i32_1 : i32, i32, i32
  }
  func.func @transform_8(%arg0: i32) -> (i32, i32, i32) {
    %c0_i32 = arith.constant 0 : i32
    %c0_i32_0 = arith.constant 0 : i32
    %c0_i32_1 = arith.constant 0 : i32
    %c0_i32_2 = arith.constant 0 : i32
    return %c0_i32, %c0_i32_0, %c0_i32_1 : i32, i32, i32
  }
  func.func @transform_9(%arg0: i32) -> (i32, i32, i32) {
    %c0_i32 = arith.constant 0 : i32
    %c0_i32_0 = arith.constant 0 : i32
    %c0_i32_1 = arith.constant 0 : i32
    %c0_i32_2 = arith.constant 0 : i32
    return %c0_i32, %c0_i32_0, %c0_i32_1 : i32, i32, i32
  }
  func.func @transform_10(%arg0: i32) -> (i32, i32, i32, i32) {
    %c0_i32 = arith.constant 0 : i32
    %c0_i32_0 = arith.constant 0 : i32
    %c0_i32_1 = arith.constant 0 : i32
    %c0_i32_2 = arith.constant 0 : i32
    %c0_i32_3 = arith.constant 0 : i32
    return %c0_i32, %c0_i32_0, %c0_i32_1, %c0_i32_2 : i32, i32, i32, i32
  }
  func.func @transform_11(%arg0: i32) -> (i32, i32, i32, i32) {
    %c0_i32 = arith.constant 0 : i32
    %c0_i32_0 = arith.constant 0 : i32
    %c0_i32_1 = arith.constant 0 : i32
    %c0_i32_2 = arith.constant 0 : i32
    %c0_i32_3 = arith.constant 0 : i32
    return %c0_i32, %c0_i32_0, %c0_i32_1, %c0_i32_2 : i32, i32, i32, i32
  }
  func.func @transform_12(%arg0: i32) -> (i32, i32, i32) {
    %c0_i32 = arith.constant 0 : i32
    %c0_i32_0 = arith.constant 0 : i32
    %c0_i32_1 = arith.constant 0 : i32
    %c0_i32_2 = arith.constant 0 : i32
    return %c0_i32, %c0_i32_0, %c0_i32_1 : i32, i32, i32
  }
  func.func @transform_13(%arg0: i32) -> (i32, i32) {
    %c0_i32 = arith.constant 0 : i32
    %c0_i32_0 = arith.constant 0 : i32
    %c0_i32_1 = arith.constant 0 : i32
    return %c0_i32, %c0_i32_0 : i32, i32
  }
  func.func @transform_14(%arg0: i32) -> (i32, i32, i32) {
    %c0_i32 = arith.constant 0 : i32
    %c0_i32_0 = arith.constant 0 : i32
    %c0_i32_1 = arith.constant 0 : i32
    return %arg0, %c0_i32, %c0_i32_0 : i32, i32, i32
  }
}

</mosaic_0001>

<llo_original>
// kernel: tpu_custom_call.1
$region0: #{tpu_custom_call.1}
  #allocation0 [shape = 'u32[]', space=smem, size = 0x4, offset = 0x4, fixed_abs, tag = 'smem constant byte address 0x4 - core index']
  #allocation1 [shape = 'u32[72,128]{1,0:T(1,128)}', space=vmem, size = 0x9000, scoped, tag = 'internal scratch']
  %s0 = inlined_call_operand.vmem [shape: f32[2,8,4], index: 0, kind: input, shape index: {}]
  %s1 = inlined_call_operand.vmem [shape: f32[2,8,1], index: 1, kind: input, shape index: {}]
  %s2 = inlined_call_operand.vmem [shape: f32[2,3,32], index: 2, kind: input, shape index: {}]
  %s3 = inlined_call_operand.vmem [shape: f32[4,32], index: 3, kind: input, shape index: {}]
  %s4 = inlined_call_operand.vmem [shape: f32[2,32], index: 4, kind: input, shape index: {}]
  %s5 = inlined_call_operand.vmem [shape: f32[32,4], index: 5, kind: input, shape index: {}]
  %s6 = inlined_call_operand.vmem [shape: f32[2,3,32,32], index: 6, kind: input, shape index: {}]
  %s7 = inlined_call_operand.vmem [shape: f32[2,32,64], index: 7, kind: input, shape index: {}]
  %s8 = inlined_call_operand.vmem [shape: f32[2,1,64], index: 8, kind: input, shape index: {}]
  %s9 = inlined_call_operand.vmem [shape: f32[2,13,32], index: 9, kind: input, shape index: {}]
  %s10 = inlined_call_operand.vmem [shape: f32[2,2,32,64], index: 10, kind: input, shape index: {}]
  %s11 = inlined_call_operand.vmem [shape: f32[2,2,64,32], index: 11, kind: input, shape index: {}]
  %s12 = inlined_call_operand.vmem [shape: f32[2,2,64], index: 12, kind: input, shape index: {}]
  %s13 = inlined_call_operand.vmem [shape: f32[33,4], index: 13, kind: input, shape index: {}]
  %s14 = inlined_call_operand.vmem [shape: f32[2,8,4], index: 14, kind: output, shape index: {}]
  %s15 = sld [smem:[#allocation0]]
  $region89: #{tpu_custom_call.1} parent=0
    _
  %s17 = ssub.s32 1, %s15
  %s18 = scalar_select 0, %s17, %s15
  loop: start=0, step=1, limit=4
  $region2: #{tpu_custom_call.1} parent=0 // loop_pre_header
    _
  $region3: #{tpu_custom_call.1} parent=0 // loop_header
    %s20 = sphi 0, %s24
    %p21 = scmp.ge.s32.totalorder %s20, 4
    %s30 = sphi 0, %s32
    %s33 = sphi 0, %s30
    %s34 = sphi 0, %s33
    %s50 = sphi 0, %s34
    %s56 = sphi 0, %s58
    %s59 = sphi 0, %s56
    %s60 = sphi 0, %s59
    %s76 = sphi 0, %s60
    %s82 = sphi 0, %s84
    %s85 = sphi 0, %s82
    %s86 = sphi 0, %s85
    %s102 = sphi 0, %s86
    %s106 = sphi 0, %s106
    %s108 = sphi 0, %s106
    %s109 = sphi 0, %s108
    %s123 = sphi 0, %s109
    %s127 = sphi 0, %s127
    %s129 = sphi 0, %s127
    %s130 = sphi 0, %s129
    %s144 = sphi 0, %s130
    %s148 = sphi 0, %s148
    %s150 = sphi 0, %s148
    %s151 = sphi 0, %s150
    %s165 = sphi 0, %s151
    %s169 = sphi 0, %s169
    %s171 = sphi 0, %s169
    %s172 = sphi 0, %s171
    %s186 = sphi 0, %s172
    %s190 = sphi 0, %s190
    %s192 = sphi 0, %s190
    %s193 = sphi 0, %s192
    %s207 = sphi 0, %s193
    %s211 = sphi 0, %s211
    %s213 = sphi 0, %s211
    %s214 = sphi 0, %s213
    %s228 = sphi 0, %s214
    %s232 = sphi 0, %s232
    %s234 = sphi 0, %s232
    %s235 = sphi 0, %s234
    %s249 = sphi 0, %s235
    %s253 = sphi 0, %s253
    %s255 = sphi 0, %s253
    %s256 = sphi 0, %s255
    %s270 = sphi 0, %s256
    %s274 = sphi 0, %s274
    %s276 = sphi 0, %s274
    %s277 = sphi 0, %s276
    %s291 = sphi 0, %s277
    %s295 = sphi 0, %s295
    %s297 = sphi 0, %s295
    %s298 = sphi 0, %s297
    %s312 = sphi 0, %s298
    %s316 = sphi 0, %s316
    %s318 = sphi 0, %s316
    %s319 = sphi 0, %s318
    %s333 = sphi 0, %s319
    %s339 = sphi 0, %s341
    %s342 = sphi 0, %s339
    %s343 = sphi 0, %s342
    %s359 = sphi 0, %s343
  $region4: #{tpu_custom_call.1} parent=0 // loop_header_branch
    %23 = sbr.rel (%p21) target = $region8
  $region5: #{tpu_custom_call.1} parent=0 // loop_body
    %s25 = ssub.s32 %s20, 1
    %s26 = ssub.s32 %s20, 2
    %s27 = sadd.s32 %s20, 1
    %s28 = ssub.s32 %s20, %s27
    %p29 = scmp.eq.s32.totalorder %s28, 0
    %s31 = sadd.s32 %s30, 1
    %s32 = scalar_select %p29, %s30, %s31
    %p35 = pneg %p29
    %p36 = scmp.eq.s32.totalorder %s20, 1
    %p37 = por %p35, %p36
    %p38 = scmp.ne.s32.totalorder %s30, %s33
    %p39 = scmp.eq.s32.totalorder %s20, 0
    %p40 = por %p38, %p39
    %p41 = scmp.ne.s32.totalorder %s30, %s33
    %p42 = scmp.eq.s32.totalorder %s25, 1
    %p43 = por %p41, %p42
    %p44 = scmp.ne.s32.totalorder %s33, %s34
    %p45 = scmp.eq.s32.totalorder %s25, 0
    %p46 = por %p44, %p45
    %p47 = scmp.ne.s32.totalorder %s33, %s34
    %p48 = scmp.eq.s32.totalorder %s26, 1
    %p49 = por %p47, %p48
    %p51 = scmp.ne.s32.totalorder %s34, %s50
    %p52 = scmp.eq.s32.totalorder %s26, 0
    %p53 = por %p51, %p52
    %s54 = ssub.s32 %s20, %s27
    %p55 = scmp.eq.s32.totalorder %s54, 0
    %s57 = sadd.s32 %s56, 1
    %s58 = scalar_select %p55, %s56, %s57
    %p61 = pneg %p55
    %p62 = scmp.eq.s32.totalorder %s20, 1
    %p63 = por %p61, %p62
    %p64 = scmp.ne.s32.totalorder %s56, %s59
    %p65 = scmp.eq.s32.totalorder %s20, 0
    %p66 = por %p64, %p65
    %p67 = scmp.ne.s32.totalorder %s56, %s59
    %p68 = scmp.eq.s32.totalorder %s25, 1
    %p69 = por %p67, %p68
    %p70 = scmp.ne.s32.totalorder %s59, %s60
    %p71 = scmp.eq.s32.totalorder %s25, 0
    %p72 = por %p70, %p71
    %p73 = scmp.ne.s32.totalorder %s59, %s60
    %p74 = scmp.eq.s32.totalorder %s26, 1
    %p75 = por %p73, %p74
    %p77 = scmp.ne.s32.totalorder %s60, %s76
    %p78 = scmp.eq.s32.totalorder %s26, 0
    %p79 = por %p77, %p78
    %s80 = ssub.s32 %s20, %s27
    %p81 = scmp.eq.s32.totalorder %s80, 0
    %s83 = sadd.s32 %s82, 1
    %s84 = scalar_select %p81, %s82, %s83
    %p87 = pneg %p81
    %p88 = scmp.eq.s32.totalorder %s20, 1
    %p89 = por %p87, %p88
    %p90 = scmp.ne.s32.totalorder %s82, %s85
    %p91 = scmp.eq.s32.totalorder %s20, 0
    %p92 = por %p90, %p91
    %p93 = scmp.ne.s32.totalorder %s82, %s85
    %p94 = scmp.eq.s32.totalorder %s25, 1
    %p95 = por %p93, %p94
    %p96 = scmp.ne.s32.totalorder %s85, %s86
    %p97 = scmp.eq.s32.totalorder %s25, 0
    %p98 = por %p96, %p97
    %p99 = scmp.ne.s32.totalorder %s85, %s86
    %p100 = scmp.eq.s32.totalorder %s26, 1
    %p101 = por %p99, %p100
    %p103 = scmp.ne.s32.totalorder %s86, %s102
    %p104 = scmp.eq.s32.totalorder %s26, 0
    %p105 = por %p103, %p104
    %s107 = sadd.s32 %s106, 1
    %p110 = scmp.eq.s32.totalorder %s20, 1
    %p111 = scmp.ne.s32.totalorder %s106, %s108
    %p112 = scmp.eq.s32.totalorder %s20, 0
    %p113 = por %p111, %p112
    %p114 = scmp.ne.s32.totalorder %s106, %s108
    %p115 = scmp.eq.s32.totalorder %s25, 1
    %p116 = por %p114, %p115
    %p117 = scmp.ne.s32.totalorder %s108, %s109
    %p118 = scmp.eq.s32.totalorder %s25, 0
    %p119 = por %p117, %p118
    %p120 = scmp.ne.s32.totalorder %s108, %s109
    %p121 = scmp.eq.s32.totalorder %s26, 1
    %p122 = por %p120, %p121
    %p124 = scmp.ne.s32.totalorder %s109, %s123
    %p125 = scmp.eq.s32.totalorder %s26, 0
    %p126 = por %p124, %p125
    %s128 = sadd.s32 %s127, 1
    %p131 = scmp.eq.s32.totalorder %s20, 1
    %p132 = scmp.ne.s32.totalorder %s127, %s129
    %p133 = scmp.eq.s32.totalorder %s20, 0
    %p134 = por %p132, %p133
    %p135 = scmp.ne.s32.totalorder %s127, %s129
    %p136 = scmp.eq.s32.totalorder %s25, 1
    %p137 = por %p135, %p136
    %p138 = scmp.ne.s32.totalorder %s129, %s130
    %p139 = scmp.eq.s32.totalorder %s25, 0
    %p140 = por %p138, %p139
    %p141 = scmp.ne.s32.totalorder %s129, %s130
    %p142 = scmp.eq.s32.totalorder %s26, 1
    %p143 = por %p141, %p142
    %p145 = scmp.ne.s32.totalorder %s130, %s144
    %p146 = scmp.eq.s32.totalorder %s26, 0
    %p147 = por %p145, %p146
    %s149 = sadd.s32 %s148, 1
    %p152 = scmp.eq.s32.totalorder %s20, 1
    %p153 = scmp.ne.s32.totalorder %s148, %s150
    %p154 = scmp.eq.s32.totalorder %s20, 0
    %p155 = por %p153, %p154
    %p156 = scmp.ne.s32.totalorder %s148, %s150
    %p157 = scmp.eq.s32.totalorder %s25, 1
    %p158 = por %p156, %p157
    %p159 = scmp.ne.s32.totalorder %s150, %s151
    %p160 = scmp.eq.s32.totalorder %s25, 0
    %p161 = por %p159, %p160
    %p162 = scmp.ne.s32.totalorder %s150, %s151
    %p163 = scmp.eq.s32.totalorder %s26, 1
    %p164 = por %p162, %p163
    %p166 = scmp.ne.s32.totalorder %s151, %s165
    %p167 = scmp.eq.s32.totalorder %s26, 0
    %p168 = por %p166, %p167
    %s170 = sadd.s32 %s169, 1
    %p173 = scmp.eq.s32.totalorder %s20, 1
    %p174 = scmp.ne.s32.totalorder %s169, %s171
    %p175 = scmp.eq.s32.totalorder %s20, 0
    %p176 = por %p174, %p175
    %p177 = scmp.ne.s32.totalorder %s169, %s171
    %p178 = scmp.eq.s32.totalorder %s25, 1
    %p179 = por %p177, %p178
    %p180 = scmp.ne.s32.totalorder %s171, %s172
    %p181 = scmp.eq.s32.totalorder %s25, 0
    %p182 = por %p180, %p181
    %p183 = scmp.ne.s32.totalorder %s171, %s172
    %p184 = scmp.eq.s32.totalorder %s26, 1
    %p185 = por %p183, %p184
    %p187 = scmp.ne.s32.totalorder %s172, %s186
    %p188 = scmp.eq.s32.totalorder %s26, 0
    %p189 = por %p187, %p188
    %s191 = sadd.s32 %s190, 1
    %p194 = scmp.eq.s32.totalorder %s20, 1
    %p195 = scmp.ne.s32.totalorder %s190, %s192
    %p196 = scmp.eq.s32.totalorder %s20, 0
    %p197 = por %p195, %p196
    %p198 = scmp.ne.s32.totalorder %s190, %s192
    %p199 = scmp.eq.s32.totalorder %s25, 1
    %p200 = por %p198, %p199
    %p201 = scmp.ne.s32.totalorder %s192, %s193
    %p202 = scmp.eq.s32.totalorder %s25, 0
    %p203 = por %p201, %p202
    %p204 = scmp.ne.s32.totalorder %s192, %s193
    %p205 = scmp.eq.s32.totalorder %s26, 1
    %p206 = por %p204, %p205
    %p208 = scmp.ne.s32.totalorder %s193, %s207
    %p209 = scmp.eq.s32.totalorder %s26, 0
    %p210 = por %p208, %p209
    %s212 = sadd.s32 %s211, 1
    %p215 = scmp.eq.s32.totalorder %s20, 1
    %p216 = scmp.ne.s32.totalorder %s211, %s213
    %p217 = scmp.eq.s32.totalorder %s20, 0
    %p218 = por %p216, %p217
    %p219 = scmp.ne.s32.totalorder %s211, %s213
    %p220 = scmp.eq.s32.totalorder %s25, 1
    %p221 = por %p219, %p220
    %p222 = scmp.ne.s32.totalorder %s213, %s214
    %p223 = scmp.eq.s32.totalorder %s25, 0
    %p224 = por %p222, %p223
    %p225 = scmp.ne.s32.totalorder %s213, %s214
    %p226 = scmp.eq.s32.totalorder %s26, 1
    %p227 = por %p225, %p226
    %p229 = scmp.ne.s32.totalorder %s214, %s228
    %p230 = scmp.eq.s32.totalorder %s26, 0
    %p231 = por %p229, %p230
    %s233 = sadd.s32 %s232, 1
    %p236 = scmp.eq.s32.totalorder %s20, 1
    %p237 = scmp.ne.s32.totalorder %s232, %s234
    %p238 = scmp.eq.s32.totalorder %s20, 0
    %p239 = por %p237, %p238
    %p240 = scmp.ne.s32.totalorder %s232, %s234
    %p241 = scmp.eq.s32.totalorder %s25, 1
    %p242 = por %p240, %p241
    %p243 = scmp.ne.s32.totalorder %s234, %s235
    %p244 = scmp.eq.s32.totalorder %s25, 0
    %p245 = por %p243, %p244
    %p246 = scmp.ne.s32.totalorder %s234, %s235
    %p247 = scmp.eq.s32.totalorder %s26, 1
    %p248 = por %p246, %p247
    %p250 = scmp.ne.s32.totalorder %s235, %s249
    %p251 = scmp.eq.s32.totalorder %s26, 0
    %p252 = por %p250, %p251
    %s254 = sadd.s32 %s253, 1
    %p257 = scmp.eq.s32.totalorder %s20, 1
    %p258 = scmp.ne.s32.totalorder %s253, %s255
    %p259 = scmp.eq.s32.totalorder %s20, 0
    %p260 = por %p258, %p259
    %p261 = scmp.ne.s32.totalorder %s253, %s255
    %p262 = scmp.eq.s32.totalorder %s25, 1
    %p263 = por %p261, %p262
    %p264 = scmp.ne.s32.totalorder %s255, %s256
    %p265 = scmp.eq.s32.totalorder %s25, 0
    %p266 = por %p264, %p265
    %p267 = scmp.ne.s32.totalorder %s255, %s256
    %p268 = scmp.eq.s32.totalorder %s26, 1
    %p269 = por %p267, %p268
    %p271 = scmp.ne.s32.totalorder %s256, %s270
    %p272 = scmp.eq.s32.totalorder %s26, 0
    %p273 = por %p271, %p272
    %s275 = sadd.s32 %s274, 1
    %p278 = scmp.eq.s32.totalorder %s20, 1
    %p279 = scmp.ne.s32.totalorder %s274, %s276
    %p280 = scmp.eq.s32.totalorder %s20, 0
    %p281 = por %p279, %p280
    %p282 = scmp.ne.s32.totalorder %s274, %s276
    %p283 = scmp.eq.s32.totalorder %s25, 1
    %p284 = por %p282, %p283
    %p285 = scmp.ne.s32.totalorder %s276, %s277
    %p286 = scmp.eq.s32.totalorder %s25, 0
    %p287 = por %p285, %p286
    %p288 = scmp.ne.s32.totalorder %s276, %s277
    %p289 = scmp.eq.s32.totalorder %s26, 1
    %p290 = por %p288, %p289
    %p292 = scmp.ne.s32.totalorder %s277, %s291
    %p293 = scmp.eq.s32.totalorder %s26, 0
    %p294 = por %p292, %p293
    %s296 = sadd.s32 %s295, 1
    %p299 = scmp.eq.s32.totalorder %s20, 1
    %p300 = scmp.ne.s32.totalorder %s295, %s297
    %p301 = scmp.eq.s32.totalorder %s20, 0
    %p302 = por %p300, %p301
    %p303 = scmp.ne.s32.totalorder %s295, %s297
    %p304 = scmp.eq.s32.totalorder %s25, 1
    %p305 = por %p303, %p304
    %p306 = scmp.ne.s32.totalorder %s297, %s298
    %p307 = scmp.eq.s32.totalorder %s25, 0
    %p308 = por %p306, %p307
    %p309 = scmp.ne.s32.totalorder %s297, %s298
    %p310 = scmp.eq.s32.totalorder %s26, 1
    %p311 = por %p309, %p310
    %p313 = scmp.ne.s32.totalorder %s298, %s312
    %p314 = scmp.eq.s32.totalorder %s26, 0
    %p315 = por %p313, %p314
    %s317 = sadd.s32 %s316, 1
    %p320 = scmp.eq.s32.totalorder %s20, 1
    %p321 = scmp.ne.s32.totalorder %s316, %s318
    %p322 = scmp.eq.s32.totalorder %s20, 0
    %p323 = por %p321, %p322
    %p324 = scmp.ne.s32.totalorder %s316, %s318
    %p325 = scmp.eq.s32.totalorder %s25, 1
    %p326 = por %p324, %p325
    %p327 = scmp.ne.s32.totalorder %s318, %s319
    %p328 = scmp.eq.s32.totalorder %s25, 0
    %p329 = por %p327, %p328
    %p330 = scmp.ne.s32.totalorder %s318, %s319
    %p331 = scmp.eq.s32.totalorder %s26, 1
    %p332 = por %p330, %p331
    %p334 = scmp.ne.s32.totalorder %s319, %s333
    %p335 = scmp.eq.s32.totalorder %s26, 0
    %p336 = por %p334, %p335
    %s337 = ssub.s32 %s20, %s27
    %p338 = scmp.eq.s32.totalorder %s337, 0
    %s340 = sadd.s32 %s339, 1
    %s341 = scalar_select %p338, %s339, %s340
    %p344 = pneg %p338
    %p345 = scmp.eq.s32.totalorder %s20, 1
    %p346 = por %p344, %p345
    %p347 = scmp.ne.s32.totalorder %s339, %s342
    %p348 = scmp.eq.s32.totalorder %s20, 0
    %p349 = por %p347, %p348
    %p350 = scmp.ne.s32.totalorder %s339, %s342
    %p351 = scmp.eq.s32.totalorder %s25, 1
    %p352 = por %p350, %p351
    %p353 = scmp.ne.s32.totalorder %s342, %s343
    %p354 = scmp.eq.s32.totalorder %s25, 0
    %p355 = por %p353, %p354
    %p356 = scmp.ne.s32.totalorder %s342, %s343
    %p357 = scmp.eq.s32.totalorder %s26, 1
    %p358 = por %p356, %p357
    %p360 = scmp.ne.s32.totalorder %s343, %s359
    %p361 = scmp.eq.s32.totalorder %s26, 0
    %p362 = por %p360, %p361
    %p363 = scmp.le.s32.totalorder 1, %s20
    %p364 = scmp.lt.s32.totalorder %s20, 3
    %p365 = pnand %p363, %p364
    %p366 = pneg %p365
    // Predicated region
    $region9: #{tpu_custom_call.1} parent=5 // pred_check
      _
    $region10: #{tpu_custom_call.1} parent=5 // pred_check_branch
      %368 = sbr.rel (%p365) target = $region12
    $region11: #{tpu_custom_call.1} parent=5 // pred_region
      %s369 = ssub.s32 %s20, 1
      // Predicated region
      $region13: #{tpu_custom_call.1} parent=11 // pred_check
        %p370 = pneg %p119
      $region14: #{tpu_custom_call.1} parent=11 // pred_check_branch
        %372 = sbr.rel (%p370) target = $region16
      $region15: #{tpu_custom_call.1} parent=11 // pred_region
        _
      $region16: #{tpu_custom_call.1} parent=11 // pred_fallthru
        _
      // Predicated region
      $region17: #{tpu_custom_call.1} parent=11 // pred_check
        %p373 = pneg %p140
      $region18: #{tpu_custom_call.1} parent=11 // pred_check_branch
        %375 = sbr.rel (%p373) target = $region20
      $region19: #{tpu_custom_call.1} parent=11 // pred_region
        _
      $region20: #{tpu_custom_call.1} parent=11 // pred_fallthru
        _
      // Predicated region
      $region21: #{tpu_custom_call.1} parent=11 // pred_check
        %p376 = pneg %p161
      $region22: #{tpu_custom_call.1} parent=11 // pred_check_branch
        %378 = sbr.rel (%p376) target = $region24
      $region23: #{tpu_custom_call.1} parent=11 // pred_region
        _
      $region24: #{tpu_custom_call.1} parent=11 // pred_fallthru
        _
      // Predicated region
      $region25: #{tpu_custom_call.1} parent=11 // pred_check
        %p379 = pneg %p182
      $region26: #{tpu_custom_call.1} parent=11 // pred_check_branch
        %381 = sbr.rel (%p379) target = $region28
      $region27: #{tpu_custom_call.1} parent=11 // pred_region
        _
      $region28: #{tpu_custom_call.1} parent=11 // pred_fallthru
        _
      // Predicated region
      $region29: #{tpu_custom_call.1} parent=11 // pred_check
        %p382 = pneg %p203
      $region30: #{tpu_custom_call.1} parent=11 // pred_check_branch
        %384 = sbr.rel (%p382) target = $region32
      $region31: #{tpu_custom_call.1} parent=11 // pred_region
        _
      $region32: #{tpu_custom_call.1} parent=11 // pred_fallthru
        _
      // Predicated region
      $region33: #{tpu_custom_call.1} parent=11 // pred_check
        %p385 = pneg %p224
      $region34: #{tpu_custom_call.1} parent=11 // pred_check_branch
        %387 = sbr.rel (%p385) target = $region36
      $region35: #{tpu_custom_call.1} parent=11 // pred_region
        _
      $region36: #{tpu_custom_call.1} parent=11 // pred_fallthru
        _
      // Predicated region
      $region37: #{tpu_custom_call.1} parent=11 // pred_check
        %p388 = pneg %p245
      $region38: #{tpu_custom_call.1} parent=11 // pred_check_branch
        %390 = sbr.rel (%p388) target = $region40
      $region39: #{tpu_custom_call.1} parent=11 // pred_region
        _
      $region40: #{tpu_custom_call.1} parent=11 // pred_fallthru
        _
      // Predicated region
      $region41: #{tpu_custom_call.1} parent=11 // pred_check
        %p391 = pneg %p266
      $region42: #{tpu_custom_call.1} parent=11 // pred_check_branch
        %393 = sbr.rel (%p391) target = $region44
      $region43: #{tpu_custom_call.1} parent=11 // pred_region
        _
      $region44: #{tpu_custom_call.1} parent=11 // pred_fallthru
        _
      // Predicated region
      $region45: #{tpu_custom_call.1} parent=11 // pred_check
        %p394 = pneg %p287
      $region46: #{tpu_custom_call.1} parent=11 // pred_check_branch
        %396 = sbr.rel (%p394) target = $region48
      $region47: #{tpu_custom_call.1} parent=11 // pred_region
        _
      $region48: #{tpu_custom_call.1} parent=11 // pred_fallthru
        _
      // Predicated region
      $region49: #{tpu_custom_call.1} parent=11 // pred_check
        %p397 = pneg %p308
      $region50: #{tpu_custom_call.1} parent=11 // pred_check_branch
        %399 = sbr.rel (%p397) target = $region52
      $region51: #{tpu_custom_call.1} parent=11 // pred_region
        _
      $region52: #{tpu_custom_call.1} parent=11 // pred_fallthru
        _
      // Predicated region
      $region53: #{tpu_custom_call.1} parent=11 // pred_check
        %p400 = pneg %p329
      $region54: #{tpu_custom_call.1} parent=11 // pred_check_branch
        %402 = sbr.rel (%p400) target = $region56
      $region55: #{tpu_custom_call.1} parent=11 // pred_region
        _
      $region56: #{tpu_custom_call.1} parent=11 // pred_fallthru
        _
    $region12: #{tpu_custom_call.1} parent=5 // pred_fallthru
      _
    %p403 = scmp.lt.s32.totalorder %s20, 2
    // Predicated region
    $region57: #{tpu_custom_call.1} parent=5 // pred_check
      %p404 = pneg %p403
    $region58: #{tpu_custom_call.1} parent=5 // pred_check_branch
      %406 = sbr.rel (%p404) target = $region60
    $region59: #{tpu_custom_call.1} parent=5 // pred_region
      // Predicated region
      $region61: #{tpu_custom_call.1} parent=59 // pred_check
        %p407 = pneg %p40
      $region62: #{tpu_custom_call.1} parent=59 // pred_check_branch
        %409 = sbr.rel (%p407) target = $region64
      $region63: #{tpu_custom_call.1} parent=59 // pred_region
        %p410 = scmp.lt.s32.totalorder %s20, 1
        %s411 = scalar_select %p410, %s20, 1
        %s412 = smul.addr %s411, 8
        %s413 = scalar_lea.vmem %s0, %s412
      $region64: #{tpu_custom_call.1} parent=59 // pred_fallthru
        _
      // Predicated region
      $region65: #{tpu_custom_call.1} parent=59 // pred_check
        %p414 = pneg %p66
      $region66: #{tpu_custom_call.1} parent=59 // pred_check_branch
        %416 = sbr.rel (%p414) target = $region68
      $region67: #{tpu_custom_call.1} parent=59 // pred_region
        %p417 = scmp.lt.s32.totalorder %s20, 1
        %s418 = scalar_select %p417, %s20, 1
        %s419 = smul.addr %s418, 8
        %s420 = scalar_lea.vmem %s1, %s419
      $region68: #{tpu_custom_call.1} parent=59 // pred_fallthru
        _
      // Predicated region
      $region69: #{tpu_custom_call.1} parent=59 // pred_check
        %p421 = pneg %p92
      $region70: #{tpu_custom_call.1} parent=59 // pred_check_branch
        %423 = sbr.rel (%p421) target = $region72
      $region71: #{tpu_custom_call.1} parent=59 // pred_region
        %p424 = scmp.lt.s32.totalorder %s20, 1
        %s425 = scalar_select %p424, %s20, 1
        %s426 = smul.addr %s425, 4
        %s427 = scalar_lea.vmem %s2, %s426
      $region72: #{tpu_custom_call.1} parent=59 // pred_fallthru
        _
    $region60: #{tpu_custom_call.1} parent=5 // pred_fallthru
      _
    %p428 = scmp.le.s32.totalorder 1, %s20
    %p429 = scmp.lt.s32.totalorder %s20, 3
    %p430 = pnand %p428, %p429
    %p431 = pneg %p430
    // Predicated region
    $region73: #{tpu_custom_call.1} parent=5 // pred_check
      _
    $region74: #{tpu_custom_call.1} parent=5 // pred_check_branch
      %433 = sbr.rel (%p430) target = $region76
    $region75: #{tpu_custom_call.1} parent=5 // pred_region
      %s434 = ssub.s32 %s20, 1
      %p435 = scmp.lt.s32.totalorder %s25, 1
      %s436 = scalar_select %p435, %s25, 1
      %s437 = smul.addr %s436, 8
      %s438 = scalar_lea.vmem %s0, %s437
      %p439 = pneg %p46
      %p440 = pneg %p43
      %p441 = scmp.lt.s32.totalorder %s25, 1
      %s442 = scalar_select %p441, %s25, 1
      %s443 = smul.addr %s442, 8
      %s444 = scalar_lea.vmem %s1, %s443
      %p445 = pneg %p72
      %p446 = pneg %p69
      %p447 = scmp.lt.s32.totalorder %s25, 1
      %s448 = scalar_select %p447, %s25, 1
      %s449 = smul.addr %s448, 4
      %s450 = scalar_lea.vmem %s2, %s449
      %p451 = pneg %p98
      %p452 = pneg %p95
      %p453 = pneg %p119
      %p454 = pneg %p116
      %p455 = pneg %p140
      %p456 = pneg %p137
      %p457 = pneg %p161
      %p458 = pneg %p158
      %p459 = pneg %p182
      %p460 = pneg %p179
      %p461 = pneg %p203
      %p462 = pneg %p200
      %p463 = pneg %p224
      %p464 = pneg %p221
      %p465 = pneg %p245
      %p466 = pneg %p242
      %p467 = pneg %p266
      %p468 = pneg %p263
      %p469 = pneg %p287
      %p470 = pneg %p284
      %p471 = pneg %p308
      %p472 = pneg %p305
      %p473 = pneg %p329
      %p474 = pneg %p326
      %p475 = pneg %p355
      %p476 = pneg %p352
      %p477 = scmp.lt.s32.totalorder %s25, 1
      %s478 = scalar_select %p477, %s25, 1
      %s479 = smul.addr %s478, 8
      %s480 = scalar_lea.vmem %s14, %s479
      %p481 = scmp.lt.s32.totalorder %s25, 1
      %s482 = scalar_select %p481, %s25, 1
      %s483 = smul.addr %s482, 8
      %s484 = scalar_lea.vmem %s0, %s483
      %p485 = scmp.lt.s32.totalorder %s25, 1
      %s486 = scalar_select %p485, %s25, 1
      %s487 = smul.addr %s486, 8
      %s488 = scalar_lea.vmem %s1, %s487
      %p489 = scmp.lt.s32.totalorder %s25, 1
      %s490 = scalar_select %p489, %s25, 1
      %s491 = smul.addr %s490, 4
      %s492 = scalar_lea.vmem %s2, %s491
      %p493 = scmp.lt.s32.totalorder %s25, 1
      %s494 = scalar_select %p493, %s25, 1
      %s495 = smul.addr %s494, 8
      %s496 = scalar_lea.vmem %s14, %s495
      %v497 = vld [vmem:[%s484] sm:$0xff]
      %v498 = vld [vmem:[%s488] sm:$0xff]
      %v499 = vld [vmem:[%s492] sm:$0x7]
      %v500 = vld [vmem:[%s4] sm:$0x3]
      %v501 = vld [vmem:[%s5] sm:$0xff]
      %v502 = vld [vmem:[%s5 + $0x8] sm:$0xff]
      %v503 = vld [vmem:[%s5 + $0x10] sm:$0xff]
      %v504 = vld [vmem:[%s5 + $0x18] sm:$0xff]
      %v505 = vld [vmem:[%s3] sm:$0xf]
      %v506 = vperm.slane %v500, 0
      %vm507 = vcmask 31744
      %v509 = vsel %vm507, %v497, 0
      %vm511 = vcmask 1043456
      %v513 = vsel %vm511, %v505, 0
      %515 = vmatpush.msra.mxu0 0.0
      %516 = vmatpush.msra.mxu0 0.0
      %517 = vmatpush.msra.mxu0 0.0
      %518 = vmatpush.msra.mxu0 0.0
      %519 = vmatpush.msra.mxu0 0.0
      %520 = vmatpush.msra.mxu0 0.0
      %521 = vmatpush.msra.mxu0 0.0
      %522 = vmatpush.msra.mxu0 0.0
      %523 = vmatpush.msra.mxu0 0.0
      %524 = vmatpush.msra.mxu0 0.0
      %525 = vmatpush.msra.mxu0 0.0
      %526 = vmatpush.msra.mxu0 0.0
      %527 = vmatpush.msra.mxu0 0.0
      %528 = vmatpush.msra.mxu0 0.0
      %529 = vmatpush.msra.mxu0 0.0
      %530 = vmatpush.msra.mxu0 %v513
      %531 = vmatmul.f32.gmra.mxu0 %v509
      %v532 = vpop.f32.mrf.mxu0
      %v533 = vadd.f32 %v506, %v532
      %534 = vdwg.mxu0
      %v535 = vld [vmem:[%s6] sm:$0xff]
      %v536 = vld [vmem:[%s6 + $0x8] sm:$0xff]
      %v537 = vld [vmem:[%s6 + $0x10] sm:$0xff]
      %v538 = vld [vmem:[%s6 + $0x18] sm:$0xff]
      %v539 = vld [vmem:[%s6 + $0x20] sm:$0xff]
      %v540 = vld [vmem:[%s6 + $0x28] sm:$0xff]
      %v541 = vld [vmem:[%s6 + $0x30] sm:$0xff]
      %v542 = vld [vmem:[%s6 + $0x38] sm:$0xff]
      %v543 = vld [vmem:[%s6 + $0x40] sm:$0xff]
      %v544 = vld [vmem:[%s6 + $0x48] sm:$0xff]
      %v545 = vld [vmem:[%s6 + $0x50] sm:$0xff]
      %v546 = vld [vmem:[%s6 + $0x58] sm:$0xff]
      %v547 = vld [vmem:[%s9] sm:$0xff]
      %v548 = vld [vmem:[%s9 + $0x8] sm:$0x1f]
      %v549 = vld [vmem:[%s7] sm:$0xff]
      %v550 = vld [vmem:[%s7 + $0x8] sm:$0xff]
      %v551 = vld [vmem:[%s7 + $0x10] sm:$0xff]
      %v552 = vld [vmem:[%s7 + $0x18] sm:$0xff]
      %v553 = vld [vmem:[%s8] sm:$0x1]
      %v554 = vld [vmem:[%s10] sm:$0xff]
      %v555 = vld [vmem:[%s10 + $0x8] sm:$0xff]
      %v556 = vld [vmem:[%s10 + $0x10] sm:$0xff]
      %v557 = vld [vmem:[%s10 + $0x18] sm:$0xff]
      %v558 = vld [vmem:[%s10 + $0x20] sm:$0xff]
      %v559 = vld [vmem:[%s10 + $0x28] sm:$0xff]
      %v560 = vld [vmem:[%s10 + $0x30] sm:$0xff]
      %v561 = vld [vmem:[%s10 + $0x38] sm:$0xff]
      %v562 = vld [vmem:[%s11] sm:$0xff]
      %v563 = vld [vmem:[%s11 + $0x8] sm:$0xff]
      %v564 = vld [vmem:[%s11 + $0x10] sm:$0xff]
      %v565 = vld [vmem:[%s11 + $0x18] sm:$0xff]
      %v566 = vld [vmem:[%s11 + $0x20] sm:$0xff]
      %v567 = vld [vmem:[%s11 + $0x28] sm:$0xff]
      %v568 = vld [vmem:[%s11 + $0x30] sm:$0xff]
      %v569 = vld [vmem:[%s11 + $0x38] sm:$0xff]
      %v570 = vld [vmem:[%s11 + $0x40] sm:$0xff]
      %v571 = vld [vmem:[%s11 + $0x48] sm:$0xff]
      %v572 = vld [vmem:[%s11 + $0x50] sm:$0xff]
      %v573 = vld [vmem:[%s11 + $0x58] sm:$0xff]
      %v574 = vld [vmem:[%s11 + $0x60] sm:$0xff]
      %v575 = vld [vmem:[%s11 + $0x68] sm:$0xff]
      %v576 = vld [vmem:[%s11 + $0x70] sm:$0xff]
      %v577 = vld [vmem:[%s11 + $0x78] sm:$0xff]
      %v578 = vld [vmem:[%s12] sm:$0x3]
      %vm579 = vcmask 261120
      %v581 = vsel %vm579, %v533, 0
      %583 = vmatpush.msra.mxu0 0.0
      %584 = vmatpush.msra.mxu0 0.0
      %585 = vmatpush.msra.mxu0 0.0
      %586 = vmatpush.msra.mxu0 0.0
      %587 = vmatpush.msra.mxu0 0.0
      %588 = vmatpush.msra.mxu0 0.0
      %589 = vmatpush.msra.mxu0 0.0
      %590 = vmatpush.msra.mxu0 0.0
      %591 = vmatpush.msra.mxu0 0.0
      %592 = vmatpush.msra.mxu0 0.0
      %593 = vmatpush.msra.mxu0 0.0
      %594 = vmatpush.msra.mxu0 0.0
      %595 = vmatpush.msra.mxu0 %v538
      %596 = vmatpush.msra.mxu0 %v537
      %597 = vmatpush.msra.mxu0 %v536
      %598 = vmatpush.msra.mxu0 %v535
      %599 = vmatmul.f32.gmra.mxu0 %v581
      %v600 = vpop.f32.mrf.mxu0
      %v601 = vadd.f32 0.0, %v600
      %602 = vdwg.mxu0
      %v603 = vperm.slane %v499, 0
      %v604 = vadd.f32 %v601, %v603
      %v605 = vmax.f32 %v604, 0.0
      %v606 = vperm.slane %v547, 1
      %v608 = vsel %vm579, %v605, 0
      %610 = vmatpush.msra.mxu0 0.0
      %611 = vmatpush.msra.mxu0 0.0
      %612 = vmatpush.msra.mxu0 0.0
      %613 = vmatpush.msra.mxu0 0.0
      %614 = vmatpush.msra.mxu0 0.0
      %615 = vmatpush.msra.mxu0 0.0
      %616 = vmatpush.msra.mxu0 0.0
      %617 = vmatpush.msra.mxu0 0.0
      %618 = vmatpush.msra.mxu0 0.0
      %619 = vmatpush.msra.mxu0 0.0
      %620 = vmatpush.msra.mxu0 0.0
      %621 = vmatpush.msra.mxu0 0.0
      %622 = vmatpush.msra.mxu0 %v542
      %623 = vmatpush.msra.mxu0 %v541
      %624 = vmatpush.msra.mxu0 %v540
      %625 = vmatpush.msra.mxu0 %v539
      %626 = vmatmul.f32.gmra.mxu0 %v608
      %v627 = vpop.f32.mrf.mxu0
      %v628 = vadd.f32 %v606, %v627
      %629 = vdwg.mxu0
      %v631 = vperm.slane %v553, 0
      %v634 = vsel %vm579, %v628, 0
      %636 = vmatpush.msra.mxu0 0.0
      %637 = vmatpush.msra.mxu0 0.0
      %638 = vmatpush.msra.mxu0 0.0
      %639 = vmatpush.msra.mxu0 0.0
      %640 = vmatpush.msra.mxu0 0.0
      %641 = vmatpush.msra.mxu0 0.0
      %642 = vmatpush.msra.mxu0 0.0
      %643 = vmatpush.msra.mxu0 0.0
      %644 = vmatpush.msra.mxu0 0.0
      %645 = vmatpush.msra.mxu0 0.0
      %646 = vmatpush.msra.mxu0 0.0
      %647 = vmatpush.msra.mxu0 0.0
      %648 = vmatpush.msra.mxu0 %v552
      %649 = vmatpush.msra.mxu0 %v551
      %650 = vmatpush.msra.mxu0 %v550
      %651 = vmatpush.msra.mxu0 %v549
      %652 = vmatmul.f32.gmra.mxu0 %v634
      %v653 = vpop.f32.mrf.mxu0
      %v654 = vadd.f32 %v631, %v653
      %655 = vdwg.mxu0
      %v656 = vperm.slane %v547, 0
      %v657 = vmul.f32 %v654, %v656
      %v659 = vsel %vm579, %v657, 0
      %661 = vmatpush.msra.mxu0 0.0
      %662 = vmatpush.msra.mxu0 0.0
      %663 = vmatpush.msra.mxu0 0.0
      %664 = vmatpush.msra.mxu0 0.0
      %665 = vmatpush.msra.mxu0 0.0
      %666 = vmatpush.msra.mxu0 0.0
      %667 = vmatpush.msra.mxu0 0.0
      %668 = vmatpush.msra.mxu0 0.0
      %669 = vmatpush.msra.mxu0 0.0
      %670 = vmatpush.msra.mxu0 0.0
      %671 = vmatpush.msra.mxu0 0.0
      %672 = vmatpush.msra.mxu0 0.0
      %673 = vmatpush.msra.mxu0 %v504
      %674 = vmatpush.msra.mxu0 %v503
      %675 = vmatpush.msra.mxu0 %v502
      %676 = vmatpush.msra.mxu0 %v501
      %677 = vmatmul.f32.gmra.mxu0 %v659
      %v678 = vpop.f32.mrf.mxu0
      %v679 = vadd.f32 0.0, %v678
      %680 = vdwg.mxu0
      %v681 = vmul.f32 %v679, 0.35355338
      %683 = vset.pattern.permute.xlu0 0
      %684 = vperm.xlu0 %683, %v498
      %v685 = vpop.permute.xlu0 %684
      %v687 = vadd.f32 %v681, %v685
      %v688 = vsel %vm507, %v687, -inf
      %v689 = vrot.slane %v688, 4
      %v690 = vmax.f32 %v688, %v689
      %v691 = vrot.slane %v690, 2
      %v692 = vmax.f32 %v690, %v691
      %v693 = vrot.slane %v692, 1
      %v694 = vmax.f32 %v692, %v693
      %v695 = vsub.f32 %v687, %v694
      %v696 = vmul.f32 %v695, 1.442695
      %v697 = vpow.pop %v696
      %v698 = vsel %vm507, %v697, 0.0
      %v699 = vrot.slane %v698, 4
      %v700 = vadd.f32 %v698, %v699
      %v701 = vrot.slane %v700, 2
      %v702 = vadd.f32 %v700, %v701
      %v703 = vrot.slane %v702, 1
      %v704 = vadd.f32 %v702, %v703
      %v705 = vrcp.pop %v704
      %v706 = vmul.f32 %v704, %v705
      %v707 = vsub.f32 1.0, %v706
      %v708 = vmul.f32 %v705, %v707
      %v709 = vadd.f32 %v705, %v708
      %vm710 = vweird.f32 %v704
      %vm711 = vweird.f32 %v705
      %vm712 = vmor %vm710, %vm711
      %v713 = vsel %vm712, %v705, %v709
      %v714 = vand.u32 2147483647, %v704
      %vm715 = vcmp.eq.f32.partialorder %v714, 8.507059e+37
      %v716 = vand.u32 %v704, 2147483648
      %v717 = vor.u32 1.1754944e-38, %v716
      %v718 = vsel %vm715, %v717, %v713
      %v719 = vmul.f32 %v697, %v718
      %v720 = vperm.slane %v719, 0
      %v721 = vlaneseq
      %v722 = vshrl.u32 %v721, 7
      %724 = vset.pattern.permute.xlu0 %v722
      %725 = vperm.xlu0 %724, %v720
      %v726 = vpop.permute.xlu0 %725
      %v727 = vperm.slane %v719, 1
      %v728 = vlaneseq
      %v729 = vshrl.u32 %v728, 7
      %731 = vset.pattern.permute.xlu0 %v729
      %732 = vperm.xlu0 %731, %v727
      %v733 = vpop.permute.xlu0 %732
      %v734 = vperm.slane %v719, 2
      %v735 = vlaneseq
      %v736 = vshrl.u32 %v735, 7
      %738 = vset.pattern.permute.xlu0 %v736
      %739 = vperm.xlu0 %738, %v734
      %v740 = vpop.permute.xlu0 %739
      %v741 = vperm.slane %v719, 3
      %v742 = vlaneseq
      %v743 = vshrl.u32 %v742, 7
      %745 = vset.pattern.permute.xlu0 %v743
      %746 = vperm.xlu0 %745, %v741
      %v747 = vpop.permute.xlu0 %746
      %v748 = vperm.slane %v719, 4
      %v749 = vlaneseq
      %v750 = vshrl.u32 %v749, 7
      %752 = vset.pattern.permute.xlu0 %v750
      %753 = vperm.xlu0 %752, %v748
      %v754 = vpop.permute.xlu0 %753
      %v755 = vperm.slane %v719, 5
      %v756 = vlaneseq
      %v757 = vshrl.u32 %v756, 7
      %759 = vset.pattern.permute.xlu0 %v757
      %760 = vperm.xlu0 %759, %v755
      %v761 = vpop.permute.xlu0 %760
      %v762 = vperm.slane %v719, 6
      %v763 = vlaneseq
      %v764 = vshrl.u32 %v763, 7
      %766 = vset.pattern.permute.xlu0 %v764
      %767 = vperm.xlu0 %766, %v762
      %v768 = vpop.permute.xlu0 %767
      %v769 = vperm.slane %v719, 7
      %v770 = vlaneseq
      %v771 = vshrl.u32 %v770, 7
      %773 = vset.pattern.permute.xlu0 %v771
      %774 = vperm.xlu0 %773, %v769
      %v775 = vpop.permute.xlu0 %774
      %v776 = vrot.slane %v740, 4
      %vm777 = vcmask 1047556
      %v778 = vsel %vm777, %v776, %v726
      %v780 = vunpack.c.l.s4 1983009808
      %v781 = vunpack.c.0.s8 %v780
      %v782 = vperm.slane %v778, %v781
      %v783 = vrot.slane %v747, 4
      %v784 = vsel %vm777, %v783, %v733
      %v786 = vunpack.c.l.s4 1983009808
      %v787 = vunpack.c.0.s8 %v786
      %v788 = vperm.slane %v784, %v787
      %v789 = vrot.slane %v768, 4
      %v790 = vsel %vm777, %v789, %v754
      %v792 = vunpack.c.l.s4 1983009808
      %v793 = vunpack.c.0.s8 %v792
      %v794 = vperm.slane %v790, %v793
      %v795 = vrot.slane %v775, 4
      %v796 = vsel %vm777, %v795, %v761
      %v798 = vunpack.c.l.s4 1983009808
      %v799 = vunpack.c.0.s8 %v798
      %v800 = vperm.slane %v796, %v799
      %v801 = vrot.slane %v788, 4
      %v802 = vsel %vm777, %v801, %v782
      %v803 = vrot.slane %v782, 4
      %v804 = vsel %vm777, %v788, %v803
      %v806 = vunpack.c.l.s4 1934713408
      %v807 = vunpack.c.0.s8 %v806
      %v808 = vperm.slane %v802, %v807
      %v810 = vunpack.c.l.s4 1934713408
      %v811 = vunpack.c.0.s8 %v810
      %v812 = vperm.slane %v804, %v811
      %v813 = vrot.slane %v800, 4
      %v814 = vsel %vm777, %v813, %v794
      %v815 = vrot.slane %v794, 4
      %v816 = vsel %vm777, %v800, %v815
      %v818 = vunpack.c.l.s4 1934713408
      %v819 = vunpack.c.0.s8 %v818
      %v820 = vperm.slane %v814, %v819
      %v822 = vunpack.c.l.s4 1934713408
      %v823 = vunpack.c.0.s8 %v822
      %v824 = vperm.slane %v816, %v823
      %v825 = vrot.slane %v820, 4
      %v826 = vsel %vm777, %v825, %v808
      %v827 = vrot.slane %v808, 4
      %v828 = vsel %vm777, %v820, %v827
      %v829 = vrot.slane %v824, 4
      %v830 = vsel %vm777, %v829, %v812
      %v831 = vrot.slane %v812, 4
      %v832 = vsel %vm777, %v824, %v831
      %834 = vrot.lane.b32.xlu0 %v828, 8
      %v835 = vpop.permute.xlu0 %834
      %838 = vrot.lane.b32.xlu0 %v830, 16
      %v839 = vpop.permute.xlu0 %838
      %842 = vrot.lane.b32.xlu0 %v832, 24
      %v843 = vpop.permute.xlu0 %842
      %vm845 = vcmask 64512
      %v846 = vsel %vm845, %v826, %v835
      %vm847 = vcmask 130048
      %v848 = vsel %vm847, %v846, %v839
      %vm849 = vcmask 195584
      %v850 = vsel %vm849, %v848, %v843
      %852 = vrot.lane.b32.xlu0 %v654, 96
      %v853 = vpop.permute.xlu0 %852
      %v855 = vmul.f32 %v850, %v853
      %v856 = vsel %vm579, %v855, 0.0
      %v857 = vrot.slane %v856, 4
      %v858 = vadd.f32 %v856, %v857
      %v859 = vrot.slane %v858, 2
      %v860 = vadd.f32 %v858, %v859
      %v861 = vrot.slane %v860, 1
      %v862 = vadd.f32 %v860, %v861
      %v864 = vrot.slane %v547, 2
      %v867 = vsel %vm579, %v862, 0
      %869 = vmatpush.msra.mxu0 0.0
      %870 = vmatpush.msra.mxu0 0.0
      %871 = vmatpush.msra.mxu0 0.0
      %872 = vmatpush.msra.mxu0 0.0
      %873 = vmatpush.msra.mxu0 0.0
      %874 = vmatpush.msra.mxu0 0.0
      %875 = vmatpush.msra.mxu0 0.0
      %876 = vmatpush.msra.mxu0 0.0
      %877 = vmatpush.msra.mxu0 0.0
      %878 = vmatpush.msra.mxu0 0.0
      %879 = vmatpush.msra.mxu0 0.0
      %880 = vmatpush.msra.mxu0 0.0
      %881 = vmatpush.msra.mxu0 %v546
      %882 = vmatpush.msra.mxu0 %v545
      %883 = vmatpush.msra.mxu0 %v544
      %884 = vmatpush.msra.mxu0 %v543
      %885 = vmatmul.f32.gmra.mxu0 %v867
      %v886 = vpop.f32.mrf.mxu0
      %v887 = vadd.f32 %v864, %v886
      %888 = vdwg.mxu0
      %v890 = vrot.slane %v887, 7
      %v892 = vadd.f32 %v500, %v890
      %vm893 = vcmask 254977
      %v894 = vsel %vm893, %v892, 0.0
      %895 = vadd.xlane.f32.xlu0 %v894
      %v896 = vpop.xlane.xlu0 %895
      %v897 = vrcp.pop 32.0
      %v898 = vmul.f32 32.0, %v897
      %v899 = vsub.f32 1.0, %v898
      %v900 = vmul.f32 %v897, %v899
      %v901 = vadd.f32 %v897, %v900
      %vm902 = vweird.f32 %v897
      %v903 = vsel %vm902, %v897, %v901
      %v904 = vmul.f32 %v896, %v903
      %v905 = vsub.f32 %v892, %v904
      %v906 = vmul.f32 %v905, %v905
      %v907 = vsel %vm893, %v906, 0.0
      %908 = vadd.xlane.f32.xlu0 %v907
      %v909 = vpop.xlane.xlu0 %908
      %v910 = vmul.f32 %v909, %v903
      %v911 = vadd.f32 %v910, 1e-05
      %v912 = vrsqrt.pop %v911
      %v913 = vmul.f32 %v912, %v911
      %v914 = vmul.f32 %v913, %v912
      %v915 = vmul.f32 0.5, %v914
      %v916 = vsub.f32 1.5, %v915
      %v917 = vmul.f32 %v912, %v916
      %vm918 = vweird.f32 %v911
      %vm919 = vweird.f32 %v912
      %vm920 = vmor %vm918, %vm919
      %v921 = vsel %vm920, %v912, %v917
      %v922 = vmul.f32 %v905, %v921
      %v923 = vrot.slane %v547, 4
      %v925 = vmul.f32 %v922, %v923
      %v926 = vadd.f32 %v925, %v548
      %v928 = vrot.slane %v926, 1
      %v929 = vsel %vm579, %v928, 0
      %931 = vmatpush.msra.mxu0 0.0
      %932 = vmatpush.msra.mxu0 0.0
      %933 = vmatpush.msra.mxu0 0.0
      %934 = vmatpush.msra.mxu0 0.0
      %935 = vmatpush.msra.mxu0 0.0
      %936 = vmatpush.msra.mxu0 0.0
      %937 = vmatpush.msra.mxu0 0.0
      %938 = vmatpush.msra.mxu0 0.0
      %939 = vmatpush.msra.mxu0 0.0
      %940 = vmatpush.msra.mxu0 0.0
      %941 = vmatpush.msra.mxu0 0.0
      %942 = vmatpush.msra.mxu0 0.0
      %943 = vmatpush.msra.mxu0 %v557
      %944 = vmatpush.msra.mxu0 %v556
      %945 = vmatpush.msra.mxu0 %v555
      %946 = vmatpush.msra.mxu0 %v554
      %947 = vmatmul.f32.gmra.mxu0 %v929
      %v948 = vpop.f32.mrf.mxu0
      %v949 = vadd.f32 %v578, %v948
      %950 = vdwg.mxu0
      %v951 = vmul.f32 %v949, 0.5
      %v952 = vmul.f32 %v949, 0.70710677
      %v953 = vmul.f32 %v952, %v952
      %v954 = vmin.f32 16.0, %v953
      %v955 = vmul.f32 %v954, 2.1237322e-06
      %v956 = vadd.f32 %v955, 0.00028619796
      %v957 = vmul.f32 %v954, %v956
      %v958 = vadd.f32 %v957, 0.0036580483
      %v959 = vmul.f32 %v954, %v958
      %v960 = vadd.f32 %v959, 0.05243302
      %v961 = vmul.f32 %v954, %v960
      %v962 = vadd.f32 %v961, 0.18741608
      %v963 = vmul.f32 %v954, %v962
      %v964 = vadd.f32 %v963, 1.1283791
      %v965 = vmul.f32 %v952, %v964
      %v966 = vmul.f32 %v954, 3.8918573e-05
      %v967 = vadd.f32 %v966, 0.001143296
      %v968 = vmul.f32 %v954, %v967
      %v969 = vadd.f32 %v968, 0.014752088
      %v970 = vmul.f32 %v954, %v969
      %v971 = vadd.f32 %v970, 0.112945676
      %v972 = vmul.f32 %v954, %v971
      %v973 = vadd.f32 %v972, 0.4994258
      %v974 = vmul.f32 %v954, %v973
      %v975 = vadd.f32 %v974, 1.0
      %v976 = vrcp.pop %v975
      %v977 = vmul.f32 %v975, %v976
      %v978 = vsub.f32 1.0, %v977
      %v979 = vmul.f32 %v976, %v978
      %v980 = vadd.f32 %v976, %v979
      %vm981 = vweird.f32 %v975
      %vm982 = vweird.f32 %v976
      %vm983 = vmor %vm981, %vm982
      %v984 = vsel %vm983, %v976, %v980
      %v985 = vand.u32 2147483647, %v975
      %vm986 = vcmp.eq.f32.partialorder %v985, 8.507059e+37
      %v987 = vand.u32 %v975, 2147483648
      %v988 = vor.u32 1.1754944e-38, %v987
      %v989 = vsel %vm986, %v988, %v984
      %v990 = vmul.f32 %v965, %v989
      %v991 = vmin.f32 %v990, 1.0
      %v992 = vmax.f32 %v991, -1.0
      %v993 = vadd.f32 %v992, 1.0
      %v994 = vmul.f32 %v951, %v993
      %v995 = vrot.slane %v547, 3
      %vm997 = vcmask 523264
      %v999 = vsel %vm997, %v994, 0
      %1001 = vmatpush.msra.mxu0 0.0
      %1002 = vmatpush.msra.mxu0 0.0
      %1003 = vmatpush.msra.mxu0 0.0
      %1004 = vmatpush.msra.mxu0 0.0
      %1005 = vmatpush.msra.mxu0 0.0
      %1006 = vmatpush.msra.mxu0 0.0
      %1007 = vmatpush.msra.mxu0 0.0
      %1008 = vmatpush.msra.mxu0 0.0
      %1009 = vmatpush.msra.mxu0 %v569
      %1010 = vmatpush.msra.mxu0 %v568
      %1011 = vmatpush.msra.mxu0 %v567
      %1012 = vmatpush.msra.mxu0 %v566
      %1013 = vmatpush.msra.mxu0 %v565
      %1014 = vmatpush.msra.mxu0 %v564
      %1015 = vmatpush.msra.mxu0 %v563
      %1016 = vmatpush.msra.mxu0 %v562
      %1017 = vmatmul.f32.gmra.mxu0 %v999
      %v1018 = vpop.f32.mrf.mxu0
      %v1019 = vadd.f32 %v995, %v1018
      %1020 = vdwg.mxu0
      %v1022 = vadd.f32 %v1019, %v928
      %vm1023 = vcmask 253952
      %v1024 = vsel %vm1023, %v1022, 0.0
      %1025 = vadd.xlane.f32.xlu0 %v1024
      %v1026 = vpop.xlane.xlu0 %1025
      %v1027 = vmul.f32 %v1026, %v903
      %v1028 = vsub.f32 %v1022, %v1027
      %v1029 = vmul.f32 %v1028, %v1028
      %v1030 = vsel %vm1023, %v1029, 0.0
      %1031 = vadd.xlane.f32.xlu0 %v1030
      %v1032 = vpop.xlane.xlu0 %1031
      %v1033 = vmul.f32 %v1032, %v903
      %v1034 = vadd.f32 %v1033, 1e-05
      %v1035 = vrsqrt.pop %v1034
      %v1036 = vmul.f32 %v1035, %v1034
      %v1037 = vmul.f32 %v1036, %v1035
      %v1038 = vmul.f32 0.5, %v1037
      %v1039 = vsub.f32 1.5, %v1038
      %v1040 = vmul.f32 %v1035, %v1039
      %vm1041 = vweird.f32 %v1034
      %vm1042 = vweird.f32 %v1035
      %vm1043 = vmor %vm1041, %vm1042
      %v1044 = vsel %vm1043, %v1035, %v1040
      %v1045 = vmul.f32 %v1028, %v1044
      %v1046 = vrot.slane %v547, 6
      %v1048 = vmul.f32 %v1045, %v1046
      %v1050 = vrot.slane %v548, 2
      %v1052 = vadd.f32 %v1048, %v1050
      %v1053 = vperm.slane %v1052, 0
      %v1054 = vadd.f32 %v628, %v1053
      %v1055 = vsel %vm579, %v1054, 0.0
      %1056 = vadd.xlane.f32.xlu0 %v1055
      %v1057 = vpop.xlane.xlu0 %1056
      %v1058 = vmul.f32 %v1057, %v903
      %v1059 = vsub.f32 %v1054, %v1058
      %v1060 = vmul.f32 %v1059, %v1059
      %v1061 = vsel %vm579, %v1060, 0.0
      %1062 = vadd.xlane.f32.xlu0 %v1061
      %v1063 = vpop.xlane.xlu0 %1062
      %v1064 = vmul.f32 %v1063, %v903
      %v1065 = vadd.f32 %v1064, 1e-05
      %v1066 = vrsqrt.pop %v1065
      %v1067 = vmul.f32 %v1066, %v1065
      %v1068 = vmul.f32 %v1067, %v1066
      %v1069 = vmul.f32 0.5, %v1068
      %v1070 = vsub.f32 1.5, %v1069
      %v1071 = vmul.f32 %v1066, %v1070
      %vm1072 = vweird.f32 %v1065
      %vm1073 = vweird.f32 %v1066
      %vm1074 = vmor %vm1072, %vm1073
      %v1075 = vsel %vm1074, %v1066, %v1071
      %v1076 = vmul.f32 %v1059, %v1075
      %v1077 = vperm.slane %v547, 7
      %v1078 = vmul.f32 %v1076, %v1077
      %v1079 = vperm.slane %v548, 3
      %v1080 = vadd.f32 %v1078, %v1079
      %v1081 = vperm.slane %v578, 1
      %v1083 = vsel %vm579, %v1080, 0
      %1085 = vmatpush.msra.mxu0 0.0
      %1086 = vmatpush.msra.mxu0 0.0
      %1087 = vmatpush.msra.mxu0 0.0
      %1088 = vmatpush.msra.mxu0 0.0
      %1089 = vmatpush.msra.mxu0 0.0
      %1090 = vmatpush.msra.mxu0 0.0
      %1091 = vmatpush.msra.mxu0 0.0
      %1092 = vmatpush.msra.mxu0 0.0
      %1093 = vmatpush.msra.mxu0 0.0
      %1094 = vmatpush.msra.mxu0 0.0
      %1095 = vmatpush.msra.mxu0 0.0
      %1096 = vmatpush.msra.mxu0 0.0
      %1097 = vmatpush.msra.mxu0 %v561
      %1098 = vmatpush.msra.mxu0 %v560
      %1099 = vmatpush.msra.mxu0 %v559
      %1100 = vmatpush.msra.mxu0 %v558
      %1101 = vmatmul.f32.gmra.mxu0 %v1083
      %v1102 = vpop.f32.mrf.mxu0
      %v1103 = vadd.f32 %v1081, %v1102
      %1104 = vdwg.mxu0
      %v1105 = vmul.f32 %v1103, 0.5
      %v1106 = vmul.f32 %v1103, 0.70710677
      %v1107 = vmul.f32 %v1106, %v1106
      %v1108 = vmin.f32 16.0, %v1107
      %v1109 = vmul.f32 %v1108, 2.1237322e-06
      %v1110 = vadd.f32 %v1109, 0.00028619796
      %v1111 = vmul.f32 %v1108, %v1110
      %v1112 = vadd.f32 %v1111, 0.0036580483
      %v1113 = vmul.f32 %v1108, %v1112
      %v1114 = vadd.f32 %v1113, 0.05243302
      %v1115 = vmul.f32 %v1108, %v1114
      %v1116 = vadd.f32 %v1115, 0.18741608
      %v1117 = vmul.f32 %v1108, %v1116
      %v1118 = vadd.f32 %v1117, 1.1283791
      %v1119 = vmul.f32 %v1106, %v1118
      %v1120 = vmul.f32 %v1108, 3.8918573e-05
      %v1121 = vadd.f32 %v1120, 0.001143296
      %v1122 = vmul.f32 %v1108, %v1121
      %v1123 = vadd.f32 %v1122, 0.014752088
      %v1124 = vmul.f32 %v1108, %v1123
      %v1125 = vadd.f32 %v1124, 0.112945676
      %v1126 = vmul.f32 %v1108, %v1125
      %v1127 = vadd.f32 %v1126, 0.4994258
      %v1128 = vmul.f32 %v1108, %v1127
      %v1129 = vadd.f32 %v1128, 1.0
      %v1130 = vrcp.pop %v1129
      %v1131 = vmul.f32 %v1129, %v1130
      %v1132 = vsub.f32 1.0, %v1131
      %v1133 = vmul.f32 %v1130, %v1132
      %v1134 = vadd.f32 %v1130, %v1133
      %vm1135 = vweird.f32 %v1129
      %vm1136 = vweird.f32 %v1130
      %vm1137 = vmor %vm1135, %vm1136
      %v1138 = vsel %vm1137, %v1130, %v1134
      %v1139 = vand.u32 2147483647, %v1129
      %vm1140 = vcmp.eq.f32.partialorder %v1139, 8.507059e+37
      %v1141 = vand.u32 %v1129, 2147483648
      %v1142 = vor.u32 1.1754944e-38, %v1141
      %v1143 = vsel %vm1140, %v1142, %v1138
      %v1144 = vmul.f32 %v1119, %v1143
      %v1145 = vmin.f32 %v1144, 1.0
      %v1146 = vmax.f32 %v1145, -1.0
      %v1147 = vadd.f32 %v1146, 1.0
      %v1148 = vmul.f32 %v1105, %v1147
      %v1149 = vperm.slane %v547, 4
      %v1151 = vsel %vm997, %v1148, 0
      %1153 = vmatpush.msra.mxu0 0.0
      %1154 = vmatpush.msra.mxu0 0.0
      %1155 = vmatpush.msra.mxu0 0.0
      %1156 = vmatpush.msra.mxu0 0.0
      %1157 = vmatpush.msra.mxu0 0.0
      %1158 = vmatpush.msra.mxu0 0.0
      %1159 = vmatpush.msra.mxu0 0.0
      %1160 = vmatpush.msra.mxu0 0.0
      %1161 = vmatpush.msra.mxu0 %v577
      %1162 = vmatpush.msra.mxu0 %v576
      %1163 = vmatpush.msra.mxu0 %v575
      %1164 = vmatpush.msra.mxu0 %v574
      %1165 = vmatpush.msra.mxu0 %v573
      %1166 = vmatpush.msra.mxu0 %v572
      %1167 = vmatpush.msra.mxu0 %v571
      %1168 = vmatpush.msra.mxu0 %v570
      %1169 = vmatmul.f32.gmra.mxu0 %v1151
      %v1170 = vpop.f32.mrf.mxu0
      %v1171 = vadd.f32 %v1149, %v1170
      %1172 = vdwg.mxu0
      %v1173 = vadd.f32 %v1080, %v1171
      %v1174 = vsel %vm579, %v1173, 0.0
      %1175 = vadd.xlane.f32.xlu0 %v1174
      %v1176 = vpop.xlane.xlu0 %1175
      %v1177 = vmul.f32 %v1176, %v903
      %v1178 = vsub.f32 %v1173, %v1177
      %v1179 = vmul.f32 %v1178, %v1178
      %v1180 = vsel %vm579, %v1179, 0.0
      %1181 = vadd.xlane.f32.xlu0 %v1180
      %v1182 = vpop.xlane.xlu0 %1181
      %v1183 = vmul.f32 %v1182, %v903
      %v1184 = vadd.f32 %v1183, 1e-05
      %v1185 = vrsqrt.pop %v1184
      %v1186 = vmul.f32 %v1185, %v1184
      %v1187 = vmul.f32 %v1186, %v1185
      %v1188 = vmul.f32 0.5, %v1187
      %v1189 = vsub.f32 1.5, %v1188
      %v1190 = vmul.f32 %v1185, %v1189
      %vm1191 = vweird.f32 %v1184
      %vm1192 = vweird.f32 %v1185
      %vm1193 = vmor %vm1191, %vm1192
      %v1194 = vsel %vm1193, %v1185, %v1190
      %v1195 = vmul.f32 %v1178, %v1194
      %v1196 = vperm.slane %v548, 0
      %v1197 = vmul.f32 %v1195, %v1196
      %v1198 = vperm.slane %v548, 4
      %v1199 = vadd.f32 %v1197, %v1198
      %s1200 = scalar_lea.vmem %s6, 96
      %v1201 = vld [vmem:[%s1200] sm:$0xff]
      %v1202 = vld [vmem:[%s1200 + $0x8] sm:$0xff]
      %v1203 = vld [vmem:[%s1200 + $0x10] sm:$0xff]
      %v1204 = vld [vmem:[%s1200 + $0x18] sm:$0xff]
      %v1205 = vld [vmem:[%s1200 + $0x20] sm:$0xff]
      %v1206 = vld [vmem:[%s1200 + $0x28] sm:$0xff]
      %v1207 = vld [vmem:[%s1200 + $0x30] sm:$0xff]
      %v1208 = vld [vmem:[%s1200 + $0x38] sm:$0xff]
      %v1209 = vld [vmem:[%s1200 + $0x40] sm:$0xff]
      %v1210 = vld [vmem:[%s1200 + $0x48] sm:$0xff]
      %v1211 = vld [vmem:[%s1200 + $0x50] sm:$0xff]
      %v1212 = vld [vmem:[%s1200 + $0x58] sm:$0xff]
      %s1213 = scalar_lea.vmem %s9, 16
      %v1214 = vld [vmem:[%s1213] sm:$0xff]
      %v1215 = vld [vmem:[%s1213 + $0x8] sm:$0x1f]
      %s1216 = scalar_lea.vmem %s7, 32
      %v1217 = vld [vmem:[%s1216] sm:$0xff]
      %v1218 = vld [vmem:[%s1216 + $0x8] sm:$0xff]
      %v1219 = vld [vmem:[%s1216 + $0x10] sm:$0xff]
      %v1220 = vld [vmem:[%s1216 + $0x18] sm:$0xff]
      %s1221 = scalar_lea.vmem %s8, 1
      %v1222 = vld [vmem:[%s1221] sm:$0x1]
      %s1223 = scalar_lea.vmem %s10, 64
      %v1224 = vld [vmem:[%s1223] sm:$0xff]
      %v1225 = vld [vmem:[%s1223 + $0x8] sm:$0xff]
      %v1226 = vld [vmem:[%s1223 + $0x10] sm:$0xff]
      %v1227 = vld [vmem:[%s1223 + $0x18] sm:$0xff]
      %v1228 = vld [vmem:[%s1223 + $0x20] sm:$0xff]
      %v1229 = vld [vmem:[%s1223 + $0x28] sm:$0xff]
      %v1230 = vld [vmem:[%s1223 + $0x30] sm:$0xff]
      %v1231 = vld [vmem:[%s1223 + $0x38] sm:$0xff]
      %s1232 = scalar_lea.vmem %s11, 128
      %v1233 = vld [vmem:[%s1232] sm:$0xff]
      %v1234 = vld [vmem:[%s1232 + $0x8] sm:$0xff]
      %v1235 = vld [vmem:[%s1232 + $0x10] sm:$0xff]
      %v1236 = vld [vmem:[%s1232 + $0x18] sm:$0xff]
      %v1237 = vld [vmem:[%s1232 + $0x20] sm:$0xff]
      %v1238 = vld [vmem:[%s1232 + $0x28] sm:$0xff]
      %v1239 = vld [vmem:[%s1232 + $0x30] sm:$0xff]
      %v1240 = vld [vmem:[%s1232 + $0x38] sm:$0xff]
      %v1241 = vld [vmem:[%s1232 + $0x40] sm:$0xff]
      %v1242 = vld [vmem:[%s1232 + $0x48] sm:$0xff]
      %v1243 = vld [vmem:[%s1232 + $0x50] sm:$0xff]
      %v1244 = vld [vmem:[%s1232 + $0x58] sm:$0xff]
      %v1245 = vld [vmem:[%s1232 + $0x60] sm:$0xff]
      %v1246 = vld [vmem:[%s1232 + $0x68] sm:$0xff]
      %v1247 = vld [vmem:[%s1232 + $0x70] sm:$0xff]
      %v1248 = vld [vmem:[%s1232 + $0x78] sm:$0xff]
      %s1249 = scalar_lea.vmem %s12, 2
      %v1250 = vld [vmem:[%s1249] sm:$0x3]
      %v1252 = vsel %vm579, %v1199, 0
      %1254 = vmatpush.msra.mxu0 0.0
      %1255 = vmatpush.msra.mxu0 0.0
      %1256 = vmatpush.msra.mxu0 0.0
      %1257 = vmatpush.msra.mxu0 0.0
      %1258 = vmatpush.msra.mxu0 0.0
      %1259 = vmatpush.msra.mxu0 0.0
      %1260 = vmatpush.msra.mxu0 0.0
      %1261 = vmatpush.msra.mxu0 0.0
      %1262 = vmatpush.msra.mxu0 0.0
      %1263 = vmatpush.msra.mxu0 0.0
      %1264 = vmatpush.msra.mxu0 0.0
      %1265 = vmatpush.msra.mxu0 0.0
      %1266 = vmatpush.msra.mxu0 %v1204
      %1267 = vmatpush.msra.mxu0 %v1203
      %1268 = vmatpush.msra.mxu0 %v1202
      %1269 = vmatpush.msra.mxu0 %v1201
      %1270 = vmatmul.f32.gmra.mxu0 %v1252
      %v1271 = vpop.f32.mrf.mxu0
      %v1272 = vadd.f32 0.0, %v1271
      %1273 = vdwg.mxu0
      %v1274 = vperm.slane %v499, 1
      %v1275 = vadd.f32 %v1272, %v1274
      %v1276 = vmax.f32 %v1275, 0.0
      %v1277 = vperm.slane %v1214, 1
      %v1279 = vsel %vm579, %v1276, 0
      %1281 = vmatpush.msra.mxu0 0.0
      %1282 = vmatpush.msra.mxu0 0.0
      %1283 = vmatpush.msra.mxu0 0.0
      %1284 = vmatpush.msra.mxu0 0.0
      %1285 = vmatpush.msra.mxu0 0.0
      %1286 = vmatpush.msra.mxu0 0.0
      %1287 = vmatpush.msra.mxu0 0.0
      %1288 = vmatpush.msra.mxu0 0.0
      %1289 = vmatpush.msra.mxu0 0.0
      %1290 = vmatpush.msra.mxu0 0.0
      %1291 = vmatpush.msra.mxu0 0.0
      %1292 = vmatpush.msra.mxu0 0.0
      %1293 = vmatpush.msra.mxu0 %v1208
      %1294 = vmatpush.msra.mxu0 %v1207
      %1295 = vmatpush.msra.mxu0 %v1206
      %1296 = vmatpush.msra.mxu0 %v1205
      %1297 = vmatmul.f32.gmra.mxu0 %v1279
      %v1298 = vpop.f32.mrf.mxu0
      %v1299 = vadd.f32 %v1277, %v1298
      %1300 = vdwg.mxu0
      %v1302 = vperm.slane %v1222, 0
      %v1305 = vsel %vm579, %v1299, 0
      %1307 = vmatpush.msra.mxu0 0.0
      %1308 = vmatpush.msra.mxu0 0.0
      %1309 = vmatpush.msra.mxu0 0.0
      %1310 = vmatpush.msra.mxu0 0.0
      %1311 = vmatpush.msra.mxu0 0.0
      %1312 = vmatpush.msra.mxu0 0.0
      %1313 = vmatpush.msra.mxu0 0.0
      %1314 = vmatpush.msra.mxu0 0.0
      %1315 = vmatpush.msra.mxu0 0.0
      %1316 = vmatpush.msra.mxu0 0.0
      %1317 = vmatpush.msra.mxu0 0.0
      %1318 = vmatpush.msra.mxu0 0.0
      %1319 = vmatpush.msra.mxu0 %v1220
      %1320 = vmatpush.msra.mxu0 %v1219
      %1321 = vmatpush.msra.mxu0 %v1218
      %1322 = vmatpush.msra.mxu0 %v1217
      %1323 = vmatmul.f32.gmra.mxu0 %v1305
      %v1324 = vpop.f32.mrf.mxu0
      %v1325 = vadd.f32 %v1302, %v1324
      %1326 = vdwg.mxu0
      %v1327 = vperm.slane %v1214, 0
      %v1328 = vmul.f32 %v1325, %v1327
      %v1330 = vsel %vm579, %v1328, 0
      %1332 = vmatpush.msra.mxu0 0.0
      %1333 = vmatpush.msra.mxu0 0.0
      %1334 = vmatpush.msra.mxu0 0.0
      %1335 = vmatpush.msra.mxu0 0.0
      %1336 = vmatpush.msra.mxu0 0.0
      %1337 = vmatpush.msra.mxu0 0.0
      %1338 = vmatpush.msra.mxu0 0.0
      %1339 = vmatpush.msra.mxu0 0.0
      %1340 = vmatpush.msra.mxu0 0.0
      %1341 = vmatpush.msra.mxu0 0.0
      %1342 = vmatpush.msra.mxu0 0.0
      %1343 = vmatpush.msra.mxu0 0.0
      %1344 = vmatpush.msra.mxu0 %v504
      %1345 = vmatpush.msra.mxu0 %v503
      %1346 = vmatpush.msra.mxu0 %v502
      %1347 = vmatpush.msra.mxu0 %v501
      %1348 = vmatmul.f32.gmra.mxu0 %v1330
      %v1349 = vpop.f32.mrf.mxu0
      %v1350 = vadd.f32 0.0, %v1349
      %1351 = vdwg.mxu0
      %v1352 = vmul.f32 %v1350, 0.35355338
      %v1353 = vadd.f32 %v1352, %v685
      %v1354 = vsel %vm507, %v1353, -inf
      %v1355 = vrot.slane %v1354, 4
      %v1356 = vmax.f32 %v1354, %v1355
      %v1357 = vrot.slane %v1356, 2
      %v1358 = vmax.f32 %v1356, %v1357
      %v1359 = vrot.slane %v1358, 1
      %v1360 = vmax.f32 %v1358, %v1359
      %v1361 = vsub.f32 %v1353, %v1360
      %v1362 = vmul.f32 %v1361, 1.442695
      %v1363 = vpow.pop %v1362
      %v1364 = vsel %vm507, %v1363, 0.0
      %v1365 = vrot.slane %v1364, 4
      %v1366 = vadd.f32 %v1364, %v1365
      %v1367 = vrot.slane %v1366, 2
      %v1368 = vadd.f32 %v1366, %v1367
      %v1369 = vrot.slane %v1368, 1
      %v1370 = vadd.f32 %v1368, %v1369
      %v1371 = vrcp.pop %v1370
      %v1372 = vmul.f32 %v1370, %v1371
      %v1373 = vsub.f32 1.0, %v1372
      %v1374 = vmul.f32 %v1371, %v1373
      %v1375 = vadd.f32 %v1371, %v1374
      %vm1376 = vweird.f32 %v1370
      %vm1377 = vweird.f32 %v1371
      %vm1378 = vmor %vm1376, %vm1377
      %v1379 = vsel %vm1378, %v1371, %v1375
      %v1380 = vand.u32 2147483647, %v1370
      %vm1381 = vcmp.eq.f32.partialorder %v1380, 8.507059e+37
      %v1382 = vand.u32 %v1370, 2147483648
      %v1383 = vor.u32 1.1754944e-38, %v1382
      %v1384 = vsel %vm1381, %v1383, %v1379
      %v1385 = vmul.f32 %v1363, %v1384
      %v1386 = vperm.slane %v1385, 0
      %v1387 = vlaneseq
      %v1388 = vshrl.u32 %v1387, 7
      %1390 = vset.pattern.permute.xlu0 %v1388
      %1391 = vperm.xlu0 %1390, %v1386
      %v1392 = vpop.permute.xlu0 %1391
      %v1393 = vperm.slane %v1385, 1
      %v1394 = vlaneseq
      %v1395 = vshrl.u32 %v1394, 7
      %1397 = vset.pattern.permute.xlu0 %v1395
      %1398 = vperm.xlu0 %1397, %v1393
      %v1399 = vpop.permute.xlu0 %1398
      %v1400 = vperm.slane %v1385, 2
      %v1401 = vlaneseq
      %v1402 = vshrl.u32 %v1401, 7
      %1404 = vset.pattern.permute.xlu0 %v1402
      %1405 = vperm.xlu0 %1404, %v1400
      %v1406 = vpop.permute.xlu0 %1405
      %v1407 = vperm.slane %v1385, 3
      %v1408 = vlaneseq
      %v1409 = vshrl.u32 %v1408, 7
      %1411 = vset.pattern.permute.xlu0 %v1409
      %1412 = vperm.xlu0 %1411, %v1407
      %v1413 = vpop.permute.xlu0 %1412
      %v1414 = vperm.slane %v1385, 4
      %v1415 = vlaneseq
      %v1416 = vshrl.u32 %v1415, 7
      %1418 = vset.pattern.permute.xlu0 %v1416
      %1419 = vperm.xlu0 %1418, %v1414
      %v1420 = vpop.permute.xlu0 %1419
      %v1421 = vperm.slane %v1385, 5
      %v1422 = vlaneseq
      %v1423 = vshrl.u32 %v1422, 7
      %1425 = vset.pattern.permute.xlu0 %v1423
      %1426 = vperm.xlu0 %1425, %v1421
      %v1427 = vpop.permute.xlu0 %1426
      %v1428 = vperm.slane %v1385, 6
      %v1429 = vlaneseq
      %v1430 = vshrl.u32 %v1429, 7
      %1432 = vset.pattern.permute.xlu0 %v1430
      %1433 = vperm.xlu0 %1432, %v1428
      %v1434 = vpop.permute.xlu0 %1433
      %v1435 = vperm.slane %v1385, 7
      %v1436 = vlaneseq
      %v1437 = vshrl.u32 %v1436, 7
      %1439 = vset.pattern.permute.xlu0 %v1437
      %1440 = vperm.xlu0 %1439, %v1435
      %v1441 = vpop.permute.xlu0 %1440
      %v1442 = vrot.slane %v1406, 4
      %v1443 = vsel %vm777, %v1442, %v1392
      %v1445 = vunpack.c.l.s4 1983009808
      %v1446 = vunpack.c.0.s8 %v1445
      %v1447 = vperm.slane %v1443, %v1446
      %v1448 = vrot.slane %v1413, 4
      %v1449 = vsel %vm777, %v1448, %v1399
      %v1451 = vunpack.c.l.s4 1983009808
      %v1452 = vunpack.c.0.s8 %v1451
      %v1453 = vperm.slane %v1449, %v1452
      %v1454 = vrot.slane %v1434, 4
      %v1455 = vsel %vm777, %v1454, %v1420
      %v1457 = vunpack.c.l.s4 1983009808
      %v1458 = vunpack.c.0.s8 %v1457
      %v1459 = vperm.slane %v1455, %v1458
      %v1460 = vrot.slane %v1441, 4
      %v1461 = vsel %vm777, %v1460, %v1427
      %v1463 = vunpack.c.l.s4 1983009808
      %v1464 = vunpack.c.0.s8 %v1463
      %v1465 = vperm.slane %v1461, %v1464
      %v1466 = vrot.slane %v1453, 4
      %v1467 = vsel %vm777, %v1466, %v1447
      %v1468 = vrot.slane %v1447, 4
      %v1469 = vsel %vm777, %v1453, %v1468
      %v1471 = vunpack.c.l.s4 1934713408
      %v1472 = vunpack.c.0.s8 %v1471
      %v1473 = vperm.slane %v1467, %v1472
      %v1475 = vunpack.c.l.s4 1934713408
      %v1476 = vunpack.c.0.s8 %v1475
      %v1477 = vperm.slane %v1469, %v1476
      %v1478 = vrot.slane %v1465, 4
      %v1479 = vsel %vm777, %v1478, %v1459
      %v1480 = vrot.slane %v1459, 4
      %v1481 = vsel %vm777, %v1465, %v1480
      %v1483 = vunpack.c.l.s4 1934713408
      %v1484 = vunpack.c.0.s8 %v1483
      %v1485 = vperm.slane %v1479, %v1484
      %v1487 = vunpack.c.l.s4 1934713408
      %v1488 = vunpack.c.0.s8 %v1487
      %v1489 = vperm.slane %v1481, %v1488
      %v1490 = vrot.slane %v1485, 4
      %v1491 = vsel %vm777, %v1490, %v1473
      %v1492 = vrot.slane %v1473, 4
      %v1493 = vsel %vm777, %v1485, %v1492
      %v1494 = vrot.slane %v1489, 4
      %v1495 = vsel %vm777, %v1494, %v1477
      %v1496 = vrot.slane %v1477, 4
      %v1497 = vsel %vm777, %v1489, %v1496
      %1499 = vrot.lane.b32.xlu0 %v1493, 8
      %v1500 = vpop.permute.xlu0 %1499
      %1503 = vrot.lane.b32.xlu0 %v1495, 16
      %v1504 = vpop.permute.xlu0 %1503
      %1507 = vrot.lane.b32.xlu0 %v1497, 24
      %v1508 = vpop.permute.xlu0 %1507
      %v1510 = vsel %vm845, %v1491, %v1500
      %v1511 = vsel %vm847, %v1510, %v1504
      %v1512 = vsel %vm849, %v1511, %v1508
      %1514 = vrot.lane.b32.xlu0 %v1325, 96
      %v1515 = vpop.permute.xlu0 %1514
      %v1517 = vmul.f32 %v1512, %v1515
      %v1518 = vsel %vm579, %v1517, 0.0
      %v1519 = vrot.slane %v1518, 4
      %v1520 = vadd.f32 %v1518, %v1519
      %v1521 = vrot.slane %v1520, 2
      %v1522 = vadd.f32 %v1520, %v1521
      %v1523 = vrot.slane %v1522, 1
      %v1524 = vadd.f32 %v1522, %v1523
      %v1526 = vrot.slane %v1214, 2
      %v1529 = vsel %vm579, %v1524, 0
      %1531 = vmatpush.msra.mxu0 0.0
      %1532 = vmatpush.msra.mxu0 0.0
      %1533 = vmatpush.msra.mxu0 0.0
      %1534 = vmatpush.msra.mxu0 0.0
      %1535 = vmatpush.msra.mxu0 0.0
      %1536 = vmatpush.msra.mxu0 0.0
      %1537 = vmatpush.msra.mxu0 0.0
      %1538 = vmatpush.msra.mxu0 0.0
      %1539 = vmatpush.msra.mxu0 0.0
      %1540 = vmatpush.msra.mxu0 0.0
      %1541 = vmatpush.msra.mxu0 0.0
      %1542 = vmatpush.msra.mxu0 0.0
      %1543 = vmatpush.msra.mxu0 %v1212
      %1544 = vmatpush.msra.mxu0 %v1211
      %1545 = vmatpush.msra.mxu0 %v1210
      %1546 = vmatpush.msra.mxu0 %v1209
      %1547 = vmatmul.f32.gmra.mxu0 %v1529
      %v1548 = vpop.f32.mrf.mxu0
      %v1549 = vadd.f32 %v1526, %v1548
      %1550 = vdwg.mxu0
      %v1552 = vrot.slane %v1549, 7
      %v1554 = vadd.f32 %v500, %v1552
      %v1555 = vsel %vm893, %v1554, 0.0
      %1556 = vadd.xlane.f32.xlu0 %v1555
      %v1557 = vpop.xlane.xlu0 %1556
      %v1558 = vmul.f32 %v1557, %v903
      %v1559 = vsub.f32 %v1554, %v1558
      %v1560 = vmul.f32 %v1559, %v1559
      %v1561 = vsel %vm893, %v1560, 0.0
      %1562 = vadd.xlane.f32.xlu0 %v1561
      %v1563 = vpop.xlane.xlu0 %1562
      %v1564 = vmul.f32 %v1563, %v903
      %v1565 = vadd.f32 %v1564, 1e-05
      %v1566 = vrsqrt.pop %v1565
      %v1567 = vmul.f32 %v1566, %v1565
      %v1568 = vmul.f32 %v1567, %v1566
      %v1569 = vmul.f32 0.5, %v1568
      %v1570 = vsub.f32 1.5, %v1569
      %v1571 = vmul.f32 %v1566, %v1570
      %vm1572 = vweird.f32 %v1565
      %vm1573 = vweird.f32 %v1566
      %vm1574 = vmor %vm1572, %vm1573
      %v1575 = vsel %vm1574, %v1566, %v1571
      %v1576 = vmul.f32 %v1559, %v1575
      %v1577 = vrot.slane %v1214, 4
      %v1579 = vmul.f32 %v1576, %v1577
      %v1580 = vadd.f32 %v1579, %v1215
      %v1582 = vrot.slane %v1580, 1
      %v1583 = vsel %vm579, %v1582, 0
      %1585 = vmatpush.msra.mxu0 0.0
      %1586 = vmatpush.msra.mxu0 0.0
      %1587 = vmatpush.msra.mxu0 0.0
      %1588 = vmatpush.msra.mxu0 0.0
      %1589 = vmatpush.msra.mxu0 0.0
      %1590 = vmatpush.msra.mxu0 0.0
      %1591 = vmatpush.msra.mxu0 0.0
      %1592 = vmatpush.msra.mxu0 0.0
      %1593 = vmatpush.msra.mxu0 0.0
      %1594 = vmatpush.msra.mxu0 0.0
      %1595 = vmatpush.msra.mxu0 0.0
      %1596 = vmatpush.msra.mxu0 0.0
      %1597 = vmatpush.msra.mxu0 %v1227
      %1598 = vmatpush.msra.mxu0 %v1226
      %1599 = vmatpush.msra.mxu0 %v1225
      %1600 = vmatpush.msra.mxu0 %v1224
      %1601 = vmatmul.f32.gmra.mxu0 %v1583
      %v1602 = vpop.f32.mrf.mxu0
      %v1603 = vadd.f32 %v1250, %v1602
      %1604 = vdwg.mxu0
      %v1605 = vmul.f32 %v1603, 0.5
      %v1606 = vmul.f32 %v1603, 0.70710677
      %v1607 = vmul.f32 %v1606, %v1606
      %v1608 = vmin.f32 16.0, %v1607
      %v1609 = vmul.f32 %v1608, 2.1237322e-06
      %v1610 = vadd.f32 %v1609, 0.00028619796
      %v1611 = vmul.f32 %v1608, %v1610
      %v1612 = vadd.f32 %v1611, 0.0036580483
      %v1613 = vmul.f32 %v1608, %v1612
      %v1614 = vadd.f32 %v1613, 0.05243302
      %v1615 = vmul.f32 %v1608, %v1614
      %v1616 = vadd.f32 %v1615, 0.18741608
      %v1617 = vmul.f32 %v1608, %v1616
      %v1618 = vadd.f32 %v1617, 1.1283791
      %v1619 = vmul.f32 %v1606, %v1618
      %v1620 = vmul.f32 %v1608, 3.8918573e-05
      %v1621 = vadd.f32 %v1620, 0.001143296
      %v1622 = vmul.f32 %v1608, %v1621
      %v1623 = vadd.f32 %v1622, 0.014752088
      %v1624 = vmul.f32 %v1608, %v1623
      %v1625 = vadd.f32 %v1624, 0.112945676
      %v1626 = vmul.f32 %v1608, %v1625
      %v1627 = vadd.f32 %v1626, 0.4994258
      %v1628 = vmul.f32 %v1608, %v1627
      %v1629 = vadd.f32 %v1628, 1.0
      %v1630 = vrcp.pop %v1629
      %v1631 = vmul.f32 %v1629, %v1630
      %v1632 = vsub.f32 1.0, %v1631
      %v1633 = vmul.f32 %v1630, %v1632
      %v1634 = vadd.f32 %v1630, %v1633
      %vm1635 = vweird.f32 %v1629
      %vm1636 = vweird.f32 %v1630
      %vm1637 = vmor %vm1635, %vm1636
      %v1638 = vsel %vm1637, %v1630, %v1634
      %v1639 = vand.u32 2147483647, %v1629
      %vm1640 = vcmp.eq.f32.partialorder %v1639, 8.507059e+37
      %v1641 = vand.u32 %v1629, 2147483648
      %v1642 = vor.u32 1.1754944e-38, %v1641
      %v1643 = vsel %vm1640, %v1642, %v1638
      %v1644 = vmul.f32 %v1619, %v1643
      %v1645 = vmin.f32 %v1644, 1.0
      %v1646 = vmax.f32 %v1645, -1.0
      %v1647 = vadd.f32 %v1646, 1.0
      %v1648 = vmul.f32 %v1605, %v1647
      %v1649 = vrot.slane %v1214, 3
      %v1652 = vsel %vm997, %v1648, 0
      %1654 = vmatpush.msra.mxu0 0.0
      %1655 = vmatpush.msra.mxu0 0.0
      %1656 = vmatpush.msra.mxu0 0.0
      %1657 = vmatpush.msra.mxu0 0.0
      %1658 = vmatpush.msra.mxu0 0.0
      %1659 = vmatpush.msra.mxu0 0.0
      %1660 = vmatpush.msra.mxu0 0.0
      %1661 = vmatpush.msra.mxu0 0.0
      %1662 = vmatpush.msra.mxu0 %v1240
      %1663 = vmatpush.msra.mxu0 %v1239
      %1664 = vmatpush.msra.mxu0 %v1238
      %1665 = vmatpush.msra.mxu0 %v1237
      %1666 = vmatpush.msra.mxu0 %v1236
      %1667 = vmatpush.msra.mxu0 %v1235
      %1668 = vmatpush.msra.mxu0 %v1234
      %1669 = vmatpush.msra.mxu0 %v1233
      %1670 = vmatmul.f32.gmra.mxu0 %v1652
      %v1671 = vpop.f32.mrf.mxu0
      %v1672 = vadd.f32 %v1649, %v1671
      %1673 = vdwg.mxu0
      %v1675 = vadd.f32 %v1672, %v1582
      %v1676 = vsel %vm1023, %v1675, 0.0
      %1677 = vadd.xlane.f32.xlu0 %v1676
      %v1678 = vpop.xlane.xlu0 %1677
      %v1679 = vmul.f32 %v1678, %v903
      %v1680 = vsub.f32 %v1675, %v1679
      %v1681 = vmul.f32 %v1680, %v1680
      %v1682 = vsel %vm1023, %v1681, 0.0
      %1683 = vadd.xlane.f32.xlu0 %v1682
      %v1684 = vpop.xlane.xlu0 %1683
      %v1685 = vmul.f32 %v1684, %v903
      %v1686 = vadd.f32 %v1685, 1e-05
      %v1687 = vrsqrt.pop %v1686
      %v1688 = vmul.f32 %v1687, %v1686
      %v1689 = vmul.f32 %v1688, %v1687
      %v1690 = vmul.f32 0.5, %v1689
      %v1691 = vsub.f32 1.5, %v1690
      %v1692 = vmul.f32 %v1687, %v1691
      %vm1693 = vweird.f32 %v1686
      %vm1694 = vweird.f32 %v1687
      %vm1695 = vmor %vm1693, %vm1694
      %v1696 = vsel %vm1695, %v1687, %v1692
      %v1697 = vmul.f32 %v1680, %v1696
      %v1698 = vrot.slane %v1214, 6
      %v1700 = vmul.f32 %v1697, %v1698
      %v1702 = vrot.slane %v1215, 2
      %v1704 = vadd.f32 %v1700, %v1702
      %v1705 = vperm.slane %v1704, 0
      %v1706 = vadd.f32 %v1299, %v1705
      %v1707 = vsel %vm579, %v1706, 0.0
      %1708 = vadd.xlane.f32.xlu0 %v1707
      %v1709 = vpop.xlane.xlu0 %1708
      %v1710 = vmul.f32 %v1709, %v903
      %v1711 = vsub.f32 %v1706, %v1710
      %v1712 = vmul.f32 %v1711, %v1711
      %v1713 = vsel %vm579, %v1712, 0.0
      %1714 = vadd.xlane.f32.xlu0 %v1713
      %v1715 = vpop.xlane.xlu0 %1714
      %v1716 = vmul.f32 %v1715, %v903
      %v1717 = vadd.f32 %v1716, 1e-05
      %v1718 = vrsqrt.pop %v1717
      %v1719 = vmul.f32 %v1718, %v1717
      %v1720 = vmul.f32 %v1719, %v1718
      %v1721 = vmul.f32 0.5, %v1720
      %v1722 = vsub.f32 1.5, %v1721
      %v1723 = vmul.f32 %v1718, %v1722
      %vm1724 = vweird.f32 %v1717
      %vm1725 = vweird.f32 %v1718
      %vm1726 = vmor %vm1724, %vm1725
      %v1727 = vsel %vm1726, %v1718, %v1723
      %v1728 = vmul.f32 %v1711, %v1727
      %v1729 = vperm.slane %v1214, 7
      %v1730 = vmul.f32 %v1728, %v1729
      %v1731 = vperm.slane %v1215, 3
      %v1732 = vadd.f32 %v1730, %v1731
      %v1733 = vperm.slane %v1250, 1
      %v1735 = vsel %vm579, %v1732, 0
      %1737 = vmatpush.msra.mxu0 0.0
      %1738 = vmatpush.msra.mxu0 0.0
      %1739 = vmatpush.msra.mxu0 0.0
      %1740 = vmatpush.msra.mxu0 0.0
      %1741 = vmatpush.msra.mxu0 0.0
      %1742 = vmatpush.msra.mxu0 0.0
      %1743 = vmatpush.msra.mxu0 0.0
      %1744 = vmatpush.msra.mxu0 0.0
      %1745 = vmatpush.msra.mxu0 0.0
      %1746 = vmatpush.msra.mxu0 0.0
      %1747 = vmatpush.msra.mxu0 0.0
      %1748 = vmatpush.msra.mxu0 0.0
      %1749 = vmatpush.msra.mxu0 %v1231
      %1750 = vmatpush.msra.mxu0 %v1230
      %1751 = vmatpush.msra.mxu0 %v1229
      %1752 = vmatpush.msra.mxu0 %v1228
      %1753 = vmatmul.f32.gmra.mxu0 %v1735
      %v1754 = vpop.f32.mrf.mxu0
      %v1755 = vadd.f32 %v1733, %v1754
      %1756 = vdwg.mxu0
      %v1757 = vmul.f32 %v1755, 0.5
      %v1758 = vmul.f32 %v1755, 0.70710677
      %v1759 = vmul.f32 %v1758, %v1758
      %v1760 = vmin.f32 16.0, %v1759
      %v1761 = vmul.f32 %v1760, 2.1237322e-06
      %v1762 = vadd.f32 %v1761, 0.00028619796
      %v1763 = vmul.f32 %v1760, %v1762
      %v1764 = vadd.f32 %v1763, 0.0036580483
      %v1765 = vmul.f32 %v1760, %v1764
      %v1766 = vadd.f32 %v1765, 0.05243302
      %v1767 = vmul.f32 %v1760, %v1766
      %v1768 = vadd.f32 %v1767, 0.18741608
      %v1769 = vmul.f32 %v1760, %v1768
      %v1770 = vadd.f32 %v1769, 1.1283791
      %v1771 = vmul.f32 %v1758, %v1770
      %v1772 = vmul.f32 %v1760, 3.8918573e-05
      %v1773 = vadd.f32 %v1772, 0.001143296
      %v1774 = vmul.f32 %v1760, %v1773
      %v1775 = vadd.f32 %v1774, 0.014752088
      %v1776 = vmul.f32 %v1760, %v1775
      %v1777 = vadd.f32 %v1776, 0.112945676
      %v1778 = vmul.f32 %v1760, %v1777
      %v1779 = vadd.f32 %v1778, 0.4994258
      %v1780 = vmul.f32 %v1760, %v1779
      %v1781 = vadd.f32 %v1780, 1.0
      %v1782 = vrcp.pop %v1781
      %v1783 = vmul.f32 %v1781, %v1782
      %v1784 = vsub.f32 1.0, %v1783
      %v1785 = vmul.f32 %v1782, %v1784
      %v1786 = vadd.f32 %v1782, %v1785
      %vm1787 = vweird.f32 %v1781
      %vm1788 = vweird.f32 %v1782
      %vm1789 = vmor %vm1787, %vm1788
      %v1790 = vsel %vm1789, %v1782, %v1786
      %v1791 = vand.u32 2147483647, %v1781
      %vm1792 = vcmp.eq.f32.partialorder %v1791, 8.507059e+37
      %v1793 = vand.u32 %v1781, 2147483648
      %v1794 = vor.u32 1.1754944e-38, %v1793
      %v1795 = vsel %vm1792, %v1794, %v1790
      %v1796 = vmul.f32 %v1771, %v1795
      %v1797 = vmin.f32 %v1796, 1.0
      %v1798 = vmax.f32 %v1797, -1.0
      %v1799 = vadd.f32 %v1798, 1.0
      %v1800 = vmul.f32 %v1757, %v1799
      %v1801 = vperm.slane %v1214, 4
      %v1803 = vsel %vm997, %v1800, 0
      %1805 = vmatpush.msra.mxu0 0.0
      %1806 = vmatpush.msra.mxu0 0.0
      %1807 = vmatpush.msra.mxu0 0.0
      %1808 = vmatpush.msra.mxu0 0.0
      %1809 = vmatpush.msra.mxu0 0.0
      %1810 = vmatpush.msra.mxu0 0.0
      %1811 = vmatpush.msra.mxu0 0.0
      %1812 = vmatpush.msra.mxu0 0.0
      %1813 = vmatpush.msra.mxu0 %v1248
      %1814 = vmatpush.msra.mxu0 %v1247
      %1815 = vmatpush.msra.mxu0 %v1246
      %1816 = vmatpush.msra.mxu0 %v1245
      %1817 = vmatpush.msra.mxu0 %v1244
      %1818 = vmatpush.msra.mxu0 %v1243
      %1819 = vmatpush.msra.mxu0 %v1242
      %1820 = vmatpush.msra.mxu0 %v1241
      %1821 = vmatmul.f32.gmra.mxu0 %v1803
      %v1822 = vpop.f32.mrf.mxu0
      %v1823 = vadd.f32 %v1801, %v1822
      %1824 = vdwg.mxu0
      %v1825 = vadd.f32 %v1732, %v1823
      %v1826 = vsel %vm579, %v1825, 0.0
      %1827 = vadd.xlane.f32.xlu0 %v1826
      %v1828 = vpop.xlane.xlu0 %1827
      %v1829 = vmul.f32 %v1828, %v903
      %v1830 = vsub.f32 %v1825, %v1829
      %v1831 = vmul.f32 %v1830, %v1830
      %v1832 = vsel %vm579, %v1831, 0.0
      %1833 = vadd.xlane.f32.xlu0 %v1832
      %v1834 = vpop.xlane.xlu0 %1833
      %v1835 = vmul.f32 %v1834, %v903
      %v1836 = vadd.f32 %v1835, 1e-05
      %v1837 = vrsqrt.pop %v1836
      %v1838 = vmul.f32 %v1837, %v1836
      %v1839 = vmul.f32 %v1838, %v1837
      %v1840 = vmul.f32 0.5, %v1839
      %v1841 = vsub.f32 1.5, %v1840
      %v1842 = vmul.f32 %v1837, %v1841
      %vm1843 = vweird.f32 %v1836
      %vm1844 = vweird.f32 %v1837
      %vm1845 = vmor %vm1843, %vm1844
      %v1846 = vsel %vm1845, %v1837, %v1842
      %v1847 = vmul.f32 %v1830, %v1846
      %v1848 = vperm.slane %v1215, 0
      %v1849 = vmul.f32 %v1847, %v1848
      %v1850 = vperm.slane %v1215, 4
      %v1851 = vadd.f32 %v1849, %v1850
      %v1852 = vld [vmem:[%s13] sm:$0xff]
      %v1853 = vld [vmem:[%s13 + $0x8] sm:$0xff]
      %v1854 = vld [vmem:[%s13 + $0x10] sm:$0xff]
      %v1855 = vld [vmem:[%s13 + $0x18] sm:$0xff]
      %v1856 = vld [vmem:[%s13 + $0x20] sm:$0x1]
      %v1857 = vperm.slane %v1856, 0
      %v1859 = vsel %vm579, %v1851, 0
      %1861 = vmatpush.msra.mxu0 0.0
      %1862 = vmatpush.msra.mxu0 0.0
      %1863 = vmatpush.msra.mxu0 0.0
      %1864 = vmatpush.msra.mxu0 0.0
      %1865 = vmatpush.msra.mxu0 0.0
      %1866 = vmatpush.msra.mxu0 0.0
      %1867 = vmatpush.msra.mxu0 0.0
      %1868 = vmatpush.msra.mxu0 0.0
      %1869 = vmatpush.msra.mxu0 0.0
      %1870 = vmatpush.msra.mxu0 0.0
      %1871 = vmatpush.msra.mxu0 0.0
      %1872 = vmatpush.msra.mxu0 0.0
      %1873 = vmatpush.msra.mxu0 %v1855
      %1874 = vmatpush.msra.mxu0 %v1854
      %1875 = vmatpush.msra.mxu0 %v1853
      %1876 = vmatpush.msra.mxu0 %v1852
      %1877 = vmatmul.f32.gmra.mxu0 %v1859
      %v1878 = vpop.f32.mrf.mxu0
      %v1879 = vadd.f32 %v1857, %v1878
      %1880 = vdwg.mxu0
      %v1882 = vrot.slane %v499, 2
      %s1883 = vtos %v1882
      %v1884 = vstv %s1883
      %v1886 = vmul.f32 %v1879, %v1884
      %1887 = vst.msk [vmem:[%s496] sm:$0xff] %vm507, %v1886
      %p1888 = scmp.lt.s32.totalorder %s25, 1
      %s1889 = scalar_select %p1888, %s25, 1
      %s1890 = smul.addr %s1889, 8
      %s1891 = scalar_lea.vmem %s14, %s1890
      // Predicated region
      $region77: #{tpu_custom_call.1} parent=75 // pred_check
        %p1892 = pneg %p352
      $region78: #{tpu_custom_call.1} parent=75 // pred_check_branch
        %1894 = sbr.rel (%p1892) target = $region80
      $region79: #{tpu_custom_call.1} parent=75 // pred_region
        _
      $region80: #{tpu_custom_call.1} parent=75 // pred_fallthru
        _
    $region76: #{tpu_custom_call.1} parent=5 // pred_fallthru
      _
    %p1895 = scmp.le.s32.totalorder 2, %s20
    // Predicated region
    $region81: #{tpu_custom_call.1} parent=5 // pred_check
      %p1896 = pneg %p1895
    $region82: #{tpu_custom_call.1} parent=5 // pred_check_branch
      %1898 = sbr.rel (%p1896) target = $region84
    $region83: #{tpu_custom_call.1} parent=5 // pred_region
      %s1899 = ssub.s32 %s20, 2
      // Predicated region
      $region85: #{tpu_custom_call.1} parent=83 // pred_check
        %p1900 = pneg %p358
      $region86: #{tpu_custom_call.1} parent=83 // pred_check_branch
        %1902 = sbr.rel (%p1900) target = $region88
      $region87: #{tpu_custom_call.1} parent=83 // pred_region
        %p1903 = scmp.lt.s32.totalorder %s26, 1
        %s1904 = scalar_select %p1903, %s26, 1
        %s1905 = smul.addr %s1904, 8
        %s1906 = scalar_lea.vmem %s14, %s1905
      $region88: #{tpu_custom_call.1} parent=83 // pred_fallthru
        _
    $region84: #{tpu_custom_call.1} parent=5 // pred_fallthru
      _
  $region6: #{tpu_custom_call.1} parent=0 // loop_footer
    %s24 = sadd.s32 1, %s20
  $region7: #{tpu_custom_call.1} parent=0 // loop_footer_branch
    %19 = sbr.rel target = $region3
  $region8: #{tpu_custom_call.1} parent=0 // loop_exit
    _

</llo_original>
